<compile_context>
chip_gen: v6e
topology: v6e:2x2x1
jax: 0.10.0
libtpu: 0.0.40
codegen_flags: <defaults>
</compile_context>

<pallas_src>
import jax
import jax.numpy as jnp
from jax.experimental import pallas as pl
from jax.experimental.pallas import tpu as pltpu

HIDDEN_SIZE = 50
INPUT_SIZE = 3
OUTPUT_SIZE = 3

LANE = 128      # TPU lane width: each gate padded to its own 128-lane block
SUBLANE = 8     # f32 sublane tile: batch padded to a multiple of 8


def lstm_fc_kernel(x_ref, wih_ref, whh_ref, b_ref, wfc_ref, bfc_ref,
                   out_ref, xpre_ref):
    """LSTM recurrence (fused, lane-aligned gates) + final Linear.

    x_ref:   (T*Bp, I)    time-major flattened input, batch padded to Bp
    wih_ref: (I, 4*HP)    fused input weights,  gate blocks [i | f | o | g],
                          i/f/o blocks pre-scaled by 0.5
    whh_ref: (HP, 4*HP)   fused recurrent weights, same layout/scaling
    b_ref:   (1, 4*HP)    combined bias (b_ih + b_hh), same layout/scaling
    wfc_ref: (HP, O)      final Linear weight (rows H..HP-1 are zero)
    bfc_ref: (1, O)       final Linear bias
    out_ref: (Bp, O)      fc(h_T)
    xpre_ref:(T*Bp, 4*HP) VMEM scratch holding x @ W_ih + b for all steps
    """
    Bp = out_ref.shape[0]
    G = whh_ref.shape[1]
    HP = G // 4                       # 128-lane block per gate
    T = x_ref.shape[0] // Bp

    # --- one-shot input projection for every timestep (bias folded in) -----
    # Result parked in VMEM scratch; each step reads an aligned (Bp, G) tile.
    xpre_ref[...] = (jnp.dot(x_ref[...], wih_ref[...],
                             preferred_element_type=jnp.float32)
                     + b_ref[...])

    h = jnp.zeros((Bp, HP), jnp.float32)
    c = jnp.zeros((Bp, HP), jnp.float32)

    # --- recurrence: T is small and static -> full unroll -------------------
    for t in range(T):
        # z = 0.5*(x W_ih + h W_hh + b) on the i/f/o blocks, 1x on the g block.
        z = xpre_ref[t * Bp:(t + 1) * Bp, :] + jnp.dot(
            h, whh_ref[...], preferred_element_type=jnp.float32)   # (Bp, G)
        tz = jnp.tanh(z)                     # single EUP pass over (Bp, 4*HP)
        # Gate extracts are whole 128-lane-tile slices (offsets 0/128/256/384).
        i_g = 0.5 * tz[:, 0 * HP:1 * HP] + 0.5     # sigmoid(z_i)
        f_g = 0.5 * tz[:, 1 * HP:2 * HP] + 0.5     # sigmoid(z_f)
        o_g = 0.5 * tz[:, 2 * HP:3 * HP] + 0.5     # sigmoid(z_o)
        g_g = tz[:, 3 * HP:4 * HP]                 # tanh(z_g)
        c = f_g * c + i_g * g_g
        h = o_g * jnp.tanh(c)
        # Padded lanes/rows stay exactly 0 in c and h (zero weight columns).

    # --- fc(out[:, -1, :]) == fc(h_T) ---------------------------------------
    out_ref[...] = (jnp.dot(h, wfc_ref[...],
                            preferred_element_type=jnp.float32)
                    + bfc_ref[...]).astype(out_ref.dtype)


def lstm_network_forward(x, kparams):
    """x: (B, T, I) float32 (batch_first, like PyTorch). Returns (B, O)."""
    B, T, I = x.shape
    O = kparams["w_fc"].shape[-1]
    G = kparams["w_hh4"].shape[-1]
    Bp = ((B + SUBLANE - 1) // SUBLANE) * SUBLANE

    # Layout-only prep: time-major + batch padded to a full f32 sublane tile,
    # so every per-step row slice inside the kernel is tile-aligned.
    # Row t*Bp + b  ==  x[b, t, :] for b < B; padded rows are zero.
    x_tm = jnp.zeros((T, Bp, I), x.dtype).at[:, :B, :].set(
        jnp.transpose(x, (1, 0, 2)))
    x_tm = x_tm.reshape(T * Bp, I)

    vmem = pl.BlockSpec(memory_space=pltpu.MemorySpace.VMEM)
    out = pl.pallas_call(
        lstm_fc_kernel,
        out_shape=jax.ShapeDtypeStruct((Bp, O), jnp.float32),
        in_specs=[vmem] * 6,
        out_specs=vmem,
        scratch_shapes=[pltpu.VMEM((T * Bp, G), jnp.float32)],
    )(x_tm, kparams["w_ih4"], kparams["w_hh4"], kparams["b"],
      kparams["w_fc"], kparams["b_fc"])
    return out[:B]


def init_params(key, input_size, hidden_size, output_size):
    """Raw params mirroring PyTorch's U(-1/sqrt(H), 1/sqrt(H)) init.

    Gate weights fused along the last axis in column order [i | f | o | g]
    (each gate has its own independently-sampled block, so semantics match
    per-gate matrices).  These raw params define the reference semantics.
    """
    ks = jax.random.split(key, 6)
    k = 1.0 / jnp.sqrt(jnp.float32(hidden_size))
    u = lambda kk, shape: jax.random.uniform(kk, shape, jnp.float32, -k, k)
    G = 4 * hidden_size
    return {
        "w_ih4": u(ks[0], (input_size, G)),
        "w_hh4": u(ks[1], (hidden_size, G)),
        "b": u(ks[2], (1, G)) + u(ks[3], (1, G)),      # b_ih + b_hh
        "w_fc": u(ks[4], (hidden_size, output_size)),
        "b_fc": u(ks[5], (1, output_size)),
    }


def prepare_kernel_params(params, hidden_size):
    """Re-layout raw params for the kernel (pure layout + exact 0.5 scaling).

    * each gate gets its own 128-lane block (lanes [0, H) real, rest zero)
    * i/f/o blocks pre-scaled by 0.5 so sigmoid(z) == 0.5*tanh(0.5*z) + 0.5
    * w_hh4 / w_fc rows zero-padded H -> HP (=128)
    """
    H = hidden_size
    HP = ((H + LANE - 1) // LANE) * LANE
    O = params["w_fc"].shape[1]

    def pad_gates(w):
        rows = w.shape[0]
        out = jnp.zeros((rows, 4 * HP), jnp.float32)
        for g in range(4):
            s = 0.5 if g < 3 else 1.0          # i, f, o scaled; g untouched
            out = out.at[:, g * HP:g * HP + H].set(s * w[:, g * H:(g + 1) * H])
        return out

    w_hh4 = jnp.zeros((HP, 4 * HP), jnp.float32).at[:H, :].set(
        pad_gates(params["w_hh4"]))
    w_fc = jnp.zeros((HP, O), jnp.float32).at[:H, :].set(params["w_fc"])
    return {
        "w_ih4": pad_gates(params["w_ih4"]),
        "w_hh4": w_hh4,
        "b": pad_gates(params["b"]),
        "w_fc": w_fc,
        "b_fc": params["b_fc"],
    }


def lstm_network_ref(x, params):
    """Pure-JAX reference (standard LSTM equations on the raw params)."""
    B, T, I = x.shape
    H = params["w_hh4"].shape[0]
    W_ih, W_hh, b = params["w_ih4"], params["w_hh4"], params["b"]
    h = jnp.zeros((B, H), jnp.float32)
    c = jnp.zeros((B, H), jnp.float32)
    for t in range(T):
        z = x[:, t, :] @ W_ih + h @ W_hh + b           # columns [i | f | o | g]
        i = jax.nn.sigmoid(z[:, 0:H])
        f = jax.nn.sigmoid(z[:, H:2 * H])
        o = jax.nn.sigmoid(z[:, 2 * H:3 * H])
        g = jnp.tanh(z[:, 3 * H:4 * H])
        c = f * c + i * g
        h = o * jnp.tanh(c)
    return h @ params["w_fc"] + params["b_fc"]


if __name__ == "__main__":
    key = jax.random.PRNGKey(0)
    k_x, k_p = jax.random.split(key)

    B, T = 2, 8
    x = jax.random.normal(k_x, (B, T, INPUT_SIZE), jnp.float32)
    params = init_params(k_p, INPUT_SIZE, HIDDEN_SIZE, OUTPUT_SIZE)
    kparams = prepare_kernel_params(params, HIDDEN_SIZE)

    out = jax.block_until_ready(lstm_network_forward(x, kparams))
    ref = jax.block_until_ready(lstm_network_ref(x, params))

    assert out.shape == (B, OUTPUT_SIZE)
    # Tolerance accounts for default MXU precision (bf16 operand truncation on
    # TPU dots) plus the exact-but-differently-approximated sigmoid->tanh fold.
    if not jnp.allclose(out, ref, atol=1e-4, rtol=5e-4):
        raise AssertionError("Pallas LSTM kernel does not match JAX reference")
    print("KERNEL_OK")
</pallas_src>

<mosaic_0001>
module attributes {stable_mosaic.version = 11 : i64} {
  func.func @lstm_fc_kernel(%arg0: memref<64x3xf32, #tpu.memory_space<vmem>>, %arg1: memref<3x512xf32, #tpu.memory_space<vmem>>, %arg2: memref<128x512xf32, #tpu.memory_space<vmem>>, %arg3: memref<1x512xf32, #tpu.memory_space<vmem>>, %arg4: memref<128x3xf32, #tpu.memory_space<vmem>>, %arg5: memref<1x3xf32, #tpu.memory_space<vmem>>, %arg6: memref<8x3xf32, #tpu.memory_space<vmem>>, %arg7: memref<64x512xf32, #tpu.memory_space<vmem>>) attributes {dimension_semantics = [], scalar_prefetch = 0 : i64, scratch_operands = 1 : i64, tpu.core_type = #tpu.core_type<tc>} {
    %c0 = arith.constant 0 : index
    %c0_0 = arith.constant 0 : index
    %0 = vector.load %arg0[%c0, %c0_0] : memref<64x3xf32, #tpu.memory_space<vmem>>, vector<64x3xf32>
    %c0_1 = arith.constant 0 : index
    %c0_2 = arith.constant 0 : index
    %1 = vector.load %arg1[%c0_1, %c0_2] : memref<3x512xf32, #tpu.memory_space<vmem>>, vector<3x512xf32>
    %cst = arith.constant dense<0.000000e+00> : vector<64x512xf32>
    %2 = tpu.matmul %0, %1, %cst {dimension_numbers = #tpu.dot_dimension_numbers<[1], [0], [0], [1], [0, 0, 1, 1], [], []>} : vector<64x3xf32>, vector<3x512xf32>, vector<64x512xf32> -> vector<64x512xf32>
    %c0_3 = arith.constant 0 : index
    %c0_4 = arith.constant 0 : index
    %3 = vector.load %arg3[%c0_3, %c0_4] : memref<1x512xf32, #tpu.memory_space<vmem>>, vector<1x512xf32>
    %4 = vector.broadcast %3 : vector<1x512xf32> to vector<64x512xf32>
    %5 = arith.addf %2, %4 : vector<64x512xf32>
    %c0_5 = arith.constant 0 : index
    %c0_6 = arith.constant 0 : index
    %6 = vector.load %arg7[%c0_5, %c0_6] : memref<64x512xf32, #tpu.memory_space<vmem>>, vector<64x512xf32>
    tpu.vector_store %arg7[%c0_5, %c0_6], %5 {strides = array<i32>} : memref<64x512xf32, #tpu.memory_space<vmem>>, vector<64x512xf32>,
    %cst_7 = arith.constant 0.000000e+00 : f32
    %7 = vector.broadcast %cst_7 : f32 to vector<8x128xf32>
    %cst_8 = arith.constant 0.000000e+00 : f32
    %8 = vector.broadcast %cst_8 : f32 to vector<8x128xf32>
    %c0_9 = arith.constant 0 : index
    %c0_10 = arith.constant 0 : index
    %9 = vector.load %arg7[%c0_9, %c0_10] : memref<64x512xf32, #tpu.memory_space<vmem>>, vector<8x512xf32>
    %c0_11 = arith.constant 0 : index
    %c0_12 = arith.constant 0 : index
    %10 = vector.load %arg2[%c0_11, %c0_12] : memref<128x512xf32, #tpu.memory_space<vmem>>, vector<128x512xf32>
    %cst_13 = arith.constant dense<0.000000e+00> : vector<8x512xf32>
    %11 = tpu.matmul %7, %10, %cst_13 {dimension_numbers = #tpu.dot_dimension_numbers<[1], [0], [0], [1], [0, 0, 1, 1], [], []>} : vector<8x128xf32>, vector<128x512xf32>, vector<8x512xf32> -> vector<8x512xf32>
    %12 = arith.addf %9, %11 : vector<8x512xf32>
    %13 = math.tanh %12 : vector<8x512xf32>
    %14 = vector.extract_strided_slice %13 {offsets = [0, 0], sizes = [8, 128], strides = [1, 1]} : vector<8x512xf32> to vector<8x128xf32>
    %cst_14 = arith.constant 5.000000e-01 : f32
    %15 = vector.broadcast %cst_14 : f32 to vector<8x128xf32>
    %16 = arith.mulf %15, %14 : vector<8x128xf32>
    %cst_15 = arith.constant 5.000000e-01 : f32
    %17 = vector.broadcast %cst_15 : f32 to vector<8x128xf32>
    %18 = arith.addf %16, %17 : vector<8x128xf32>
    %19 = vector.extract_strided_slice %13 {offsets = [0, 128], sizes = [8, 128], strides = [1, 1]} : vector<8x512xf32> to vector<8x128xf32>
    %cst_16 = arith.constant 5.000000e-01 : f32
    %20 = vector.broadcast %cst_16 : f32 to vector<8x128xf32>
    %21 = arith.mulf %20, %19 : vector<8x128xf32>
    %cst_17 = arith.constant 5.000000e-01 : f32
    %22 = vector.broadcast %cst_17 : f32 to vector<8x128xf32>
    %23 = arith.addf %21, %22 : vector<8x128xf32>
    %24 = vector.extract_strided_slice %13 {offsets = [0, 256], sizes = [8, 128], strides = [1, 1]} : vector<8x512xf32> to vector<8x128xf32>
    %cst_18 = arith.constant 5.000000e-01 : f32
    %25 = vector.broadcast %cst_18 : f32 to vector<8x128xf32>
    %26 = arith.mulf %25, %24 : vector<8x128xf32>
    %cst_19 = arith.constant 5.000000e-01 : f32
    %27 = vector.broadcast %cst_19 : f32 to vector<8x128xf32>
    %28 = arith.addf %26, %27 : vector<8x128xf32>
    %29 = vector.extract_strided_slice %13 {offsets = [0, 384], sizes = [8, 128], strides = [1, 1]} : vector<8x512xf32> to vector<8x128xf32>
    %30 = arith.mulf %23, %8 : vector<8x128xf32>
    %31 = arith.mulf %18, %29 : vector<8x128xf32>
    %32 = arith.addf %30, %31 : vector<8x128xf32>
    %33 = math.tanh %32 : vector<8x128xf32>
    %34 = arith.mulf %28, %33 : vector<8x128xf32>
    %c8 = arith.constant 8 : index
    %c0_20 = arith.constant 0 : index
    %35 = vector.load %arg7[%c8, %c0_20] : memref<64x512xf32, #tpu.memory_space<vmem>>, vector<8x512xf32>
    %c0_21 = arith.constant 0 : index
    %c0_22 = arith.constant 0 : index
    %36 = vector.load %arg2[%c0_21, %c0_22] : memref<128x512xf32, #tpu.memory_space<vmem>>, vector<128x512xf32>
    %cst_23 = arith.constant dense<0.000000e+00> : vector<8x512xf32>
    %37 = tpu.matmul %34, %36, %cst_23 {dimension_numbers = #tpu.dot_dimension_numbers<[1], [0], [0], [1], [0, 0, 1, 1], [], []>} : vector<8x128xf32>, vector<128x512xf32>, vector<8x512xf32> -> vector<8x512xf32>
    %38 = arith.addf %35, %37 : vector<8x512xf32>
    %39 = math.tanh %38 : vector<8x512xf32>
    %40 = vector.extract_strided_slice %39 {offsets = [0, 0], sizes = [8, 128], strides = [1, 1]} : vector<8x512xf32> to vector<8x128xf32>
    %cst_24 = arith.constant 5.000000e-01 : f32
    %41 = vector.broadcast %cst_24 : f32 to vector<8x128xf32>
    %42 = arith.mulf %41, %40 : vector<8x128xf32>
    %cst_25 = arith.constant 5.000000e-01 : f32
    %43 = vector.broadcast %cst_25 : f32 to vector<8x128xf32>
    %44 = arith.addf %42, %43 : vector<8x128xf32>
    %45 = vector.extract_strided_slice %39 {offsets = [0, 128], sizes = [8, 128], strides = [1, 1]} : vector<8x512xf32> to vector<8x128xf32>
    %cst_26 = arith.constant 5.000000e-01 : f32
    %46 = vector.broadcast %cst_26 : f32 to vector<8x128xf32>
    %47 = arith.mulf %46, %45 : vector<8x128xf32>
    %cst_27 = arith.constant 5.000000e-01 : f32
    %48 = vector.broadcast %cst_27 : f32 to vector<8x128xf32>
    %49 = arith.addf %47, %48 : vector<8x128xf32>
    %50 = vector.extract_strided_slice %39 {offsets = [0, 256], sizes = [8, 128], strides = [1, 1]} : vector<8x512xf32> to vector<8x128xf32>
    %cst_28 = arith.constant 5.000000e-01 : f32
    %51 = vector.broadcast %cst_28 : f32 to vector<8x128xf32>
    %52 = arith.mulf %51, %50 : vector<8x128xf32>
    %cst_29 = arith.constant 5.000000e-01 : f32
    %53 = vector.broadcast %cst_29 : f32 to vector<8x128xf32>
    %54 = arith.addf %52, %53 : vector<8x128xf32>
    %55 = vector.extract_strided_slice %39 {offsets = [0, 384], sizes = [8, 128], strides = [1, 1]} : vector<8x512xf32> to vector<8x128xf32>
    %56 = arith.mulf %49, %32 : vector<8x128xf32>
    %57 = arith.mulf %44, %55 : vector<8x128xf32>
    %58 = arith.addf %56, %57 : vector<8x128xf32>
    %59 = math.tanh %58 : vector<8x128xf32>
    %60 = arith.mulf %54, %59 : vector<8x128xf32>
    %c16 = arith.constant 16 : index
    %c0_30 = arith.constant 0 : index
    %61 = vector.load %arg7[%c16, %c0_30] : memref<64x512xf32, #tpu.memory_space<vmem>>, vector<8x512xf32>
    %c0_31 = arith.constant 0 : index
    %c0_32 = arith.constant 0 : index
    %62 = vector.load %arg2[%c0_31, %c0_32] : memref<128x512xf32, #tpu.memory_space<vmem>>, vector<128x512xf32>
    %cst_33 = arith.constant dense<0.000000e+00> : vector<8x512xf32>
    %63 = tpu.matmul %60, %62, %cst_33 {dimension_numbers = #tpu.dot_dimension_numbers<[1], [0], [0], [1], [0, 0, 1, 1], [], []>} : vector<8x128xf32>, vector<128x512xf32>, vector<8x512xf32> -> vector<8x512xf32>
    %64 = arith.addf %61, %63 : vector<8x512xf32>
    %65 = math.tanh %64 : vector<8x512xf32>
    %66 = vector.extract_strided_slice %65 {offsets = [0, 0], sizes = [8, 128], strides = [1, 1]} : vector<8x512xf32> to vector<8x128xf32>
    %cst_34 = arith.constant 5.000000e-01 : f32
    %67 = vector.broadcast %cst_34 : f32 to vector<8x128xf32>
    %68 = arith.mulf %67, %66 : vector<8x128xf32>
    %cst_35 = arith.constant 5.000000e-01 : f32
    %69 = vector.broadcast %cst_35 : f32 to vector<8x128xf32>
    %70 = arith.addf %68, %69 : vector<8x128xf32>
    %71 = vector.extract_strided_slice %65 {offsets = [0, 128], sizes = [8, 128], strides = [1, 1]} : vector<8x512xf32> to vector<8x128xf32>
    %cst_36 = arith.constant 5.000000e-01 : f32
    %72 = vector.broadcast %cst_36 : f32 to vector<8x128xf32>
    %73 = arith.mulf %72, %71 : vector<8x128xf32>
    %cst_37 = arith.constant 5.000000e-01 : f32
    %74 = vector.broadcast %cst_37 : f32 to vector<8x128xf32>
    %75 = arith.addf %73, %74 : vector<8x128xf32>
    %76 = vector.extract_strided_slice %65 {offsets = [0, 256], sizes = [8, 128], strides = [1, 1]} : vector<8x512xf32> to vector<8x128xf32>
    %cst_38 = arith.constant 5.000000e-01 : f32
    %77 = vector.broadcast %cst_38 : f32 to vector<8x128xf32>
    %78 = arith.mulf %77, %76 : vector<8x128xf32>
    %cst_39 = arith.constant 5.000000e-01 : f32
    %79 = vector.broadcast %cst_39 : f32 to vector<8x128xf32>
    %80 = arith.addf %78, %79 : vector<8x128xf32>
    %81 = vector.extract_strided_slice %65 {offsets = [0, 384], sizes = [8, 128], strides = [1, 1]} : vector<8x512xf32> to vector<8x128xf32>
    %82 = arith.mulf %75, %58 : vector<8x128xf32>
    %83 = arith.mulf %70, %81 : vector<8x128xf32>
    %84 = arith.addf %82, %83 : vector<8x128xf32>
    %85 = math.tanh %84 : vector<8x128xf32>
    %86 = arith.mulf %80, %85 : vector<8x128xf32>
    %c24 = arith.constant 24 : index
    %c0_40 = arith.constant 0 : index
    %87 = vector.load %arg7[%c24, %c0_40] : memref<64x512xf32, #tpu.memory_space<vmem>>, vector<8x512xf32>
    %c0_41 = arith.constant 0 : index
    %c0_42 = arith.constant 0 : index
    %88 = vector.load %arg2[%c0_41, %c0_42] : memref<128x512xf32, #tpu.memory_space<vmem>>, vector<128x512xf32>
    %cst_43 = arith.constant dense<0.000000e+00> : vector<8x512xf32>
    %89 = tpu.matmul %86, %88, %cst_43 {dimension_numbers = #tpu.dot_dimension_numbers<[1], [0], [0], [1], [0, 0, 1, 1], [], []>} : vector<8x128xf32>, vector<128x512xf32>, vector<8x512xf32> -> vector<8x512xf32>
    %90 = arith.addf %87, %89 : vector<8x512xf32>
    %91 = math.tanh %90 : vector<8x512xf32>
    %92 = vector.extract_strided_slice %91 {offsets = [0, 0], sizes = [8, 128], strides = [1, 1]} : vector<8x512xf32> to vector<8x128xf32>
    %cst_44 = arith.constant 5.000000e-01 : f32
    %93 = vector.broadcast %cst_44 : f32 to vector<8x128xf32>
    %94 = arith.mulf %93, %92 : vector<8x128xf32>
    %cst_45 = arith.constant 5.000000e-01 : f32
    %95 = vector.broadcast %cst_45 : f32 to vector<8x128xf32>
    %96 = arith.addf %94, %95 : vector<8x128xf32>
    %97 = vector.extract_strided_slice %91 {offsets = [0, 128], sizes = [8, 128], strides = [1, 1]} : vector<8x512xf32> to vector<8x128xf32>
    %cst_46 = arith.constant 5.000000e-01 : f32
    %98 = vector.broadcast %cst_46 : f32 to vector<8x128xf32>
    %99 = arith.mulf %98, %97 : vector<8x128xf32>
    %cst_47 = arith.constant 5.000000e-01 : f32
    %100 = vector.broadcast %cst_47 : f32 to vector<8x128xf32>
    %101 = arith.addf %99, %100 : vector<8x128xf32>
    %102 = vector.extract_strided_slice %91 {offsets = [0, 256], sizes = [8, 128], strides = [1, 1]} : vector<8x512xf32> to vector<8x128xf32>
    %cst_48 = arith.constant 5.000000e-01 : f32
    %103 = vector.broadcast %cst_48 : f32 to vector<8x128xf32>
    %104 = arith.mulf %103, %102 : vector<8x128xf32>
    %cst_49 = arith.constant 5.000000e-01 : f32
    %105 = vector.broadcast %cst_49 : f32 to vector<8x128xf32>
    %106 = arith.addf %104, %105 : vector<8x128xf32>
    %107 = vector.extract_strided_slice %91 {offsets = [0, 384], sizes = [8, 128], strides = [1, 1]} : vector<8x512xf32> to vector<8x128xf32>
    %108 = arith.mulf %101, %84 : vector<8x128xf32>
    %109 = arith.mulf %96, %107 : vector<8x128xf32>
    %110 = arith.addf %108, %109 : vector<8x128xf32>
    %111 = math.tanh %110 : vector<8x128xf32>
    %112 = arith.mulf %106, %111 : vector<8x128xf32>
    %c32 = arith.constant 32 : index
    %c0_50 = arith.constant 0 : index
    %113 = vector.load %arg7[%c32, %c0_50] : memref<64x512xf32, #tpu.memory_space<vmem>>, vector<8x512xf32>
    %c0_51 = arith.constant 0 : index
    %c0_52 = arith.constant 0 : index
    %114 = vector.load %arg2[%c0_51, %c0_52] : memref<128x512xf32, #tpu.memory_space<vmem>>, vector<128x512xf32>
    %cst_53 = arith.constant dense<0.000000e+00> : vector<8x512xf32>
    %115 = tpu.matmul %112, %114, %cst_53 {dimension_numbers = #tpu.dot_dimension_numbers<[1], [0], [0], [1], [0, 0, 1, 1], [], []>} : vector<8x128xf32>, vector<128x512xf32>, vector<8x512xf32> -> vector<8x512xf32>
    %116 = arith.addf %113, %115 : vector<8x512xf32>
    %117 = math.tanh %116 : vector<8x512xf32>
    %118 = vector.extract_strided_slice %117 {offsets = [0, 0], sizes = [8, 128], strides = [1, 1]} : vector<8x512xf32> to vector<8x128xf32>
    %cst_54 = arith.constant 5.000000e-01 : f32
    %119 = vector.broadcast %cst_54 : f32 to vector<8x128xf32>
    %120 = arith.mulf %119, %118 : vector<8x128xf32>
    %cst_55 = arith.constant 5.000000e-01 : f32
    %121 = vector.broadcast %cst_55 : f32 to vector<8x128xf32>
    %122 = arith.addf %120, %121 : vector<8x128xf32>
    %123 = vector.extract_strided_slice %117 {offsets = [0, 128], sizes = [8, 128], strides = [1, 1]} : vector<8x512xf32> to vector<8x128xf32>
    %cst_56 = arith.constant 5.000000e-01 : f32
    %124 = vector.broadcast %cst_56 : f32 to vector<8x128xf32>
    %125 = arith.mulf %124, %123 : vector<8x128xf32>
    %cst_57 = arith.constant 5.000000e-01 : f32
    %126 = vector.broadcast %cst_57 : f32 to vector<8x128xf32>
    %127 = arith.addf %125, %126 : vector<8x128xf32>
    %128 = vector.extract_strided_slice %117 {offsets = [0, 256], sizes = [8, 128], strides = [1, 1]} : vector<8x512xf32> to vector<8x128xf32>
    %cst_58 = arith.constant 5.000000e-01 : f32
    %129 = vector.broadcast %cst_58 : f32 to vector<8x128xf32>
    %130 = arith.mulf %129, %128 : vector<8x128xf32>
    %cst_59 = arith.constant 5.000000e-01 : f32
    %131 = vector.broadcast %cst_59 : f32 to vector<8x128xf32>
    %132 = arith.addf %130, %131 : vector<8x128xf32>
    %133 = vector.extract_strided_slice %117 {offsets = [0, 384], sizes = [8, 128], strides = [1, 1]} : vector<8x512xf32> to vector<8x128xf32>
    %134 = arith.mulf %127, %110 : vector<8x128xf32>
    %135 = arith.mulf %122, %133 : vector<8x128xf32>
    %136 = arith.addf %134, %135 : vector<8x128xf32>
    %137 = math.tanh %136 : vector<8x128xf32>
    %138 = arith.mulf %132, %137 : vector<8x128xf32>
    %c40 = arith.constant 40 : index
    %c0_60 = arith.constant 0 : index
    %139 = vector.load %arg7[%c40, %c0_60] : memref<64x512xf32, #tpu.memory_space<vmem>>, vector<8x512xf32>
    %c0_61 = arith.constant 0 : index
    %c0_62 = arith.constant 0 : index
    %140 = vector.load %arg2[%c0_61, %c0_62] : memref<128x512xf32, #tpu.memory_space<vmem>>, vector<128x512xf32>
    %cst_63 = arith.constant dense<0.000000e+00> : vector<8x512xf32>
    %141 = tpu.matmul %138, %140, %cst_63 {dimension_numbers = #tpu.dot_dimension_numbers<[1], [0], [0], [1], [0, 0, 1, 1], [], []>} : vector<8x128xf32>, vector<128x512xf32>, vector<8x512xf32> -> vector<8x512xf32>
    %142 = arith.addf %139, %141 : vector<8x512xf32>
    %143 = math.tanh %142 : vector<8x512xf32>
    %144 = vector.extract_strided_slice %143 {offsets = [0, 0], sizes = [8, 128], strides = [1, 1]} : vector<8x512xf32> to vector<8x128xf32>
    %cst_64 = arith.constant 5.000000e-01 : f32
    %145 = vector.broadcast %cst_64 : f32 to vector<8x128xf32>
    %146 = arith.mulf %145, %144 : vector<8x128xf32>
    %cst_65 = arith.constant 5.000000e-01 : f32
    %147 = vector.broadcast %cst_65 : f32 to vector<8x128xf32>
    %148 = arith.addf %146, %147 : vector<8x128xf32>
    %149 = vector.extract_strided_slice %143 {offsets = [0, 128], sizes = [8, 128], strides = [1, 1]} : vector<8x512xf32> to vector<8x128xf32>
    %cst_66 = arith.constant 5.000000e-01 : f32
    %150 = vector.broadcast %cst_66 : f32 to vector<8x128xf32>
    %151 = arith.mulf %150, %149 : vector<8x128xf32>
    %cst_67 = arith.constant 5.000000e-01 : f32
    %152 = vector.broadcast %cst_67 : f32 to vector<8x128xf32>
    %153 = arith.addf %151, %152 : vector<8x128xf32>
    %154 = vector.extract_strided_slice %143 {offsets = [0, 256], sizes = [8, 128], strides = [1, 1]} : vector<8x512xf32> to vector<8x128xf32>
    %cst_68 = arith.constant 5.000000e-01 : f32
    %155 = vector.broadcast %cst_68 : f32 to vector<8x128xf32>
    %156 = arith.mulf %155, %154 : vector<8x128xf32>
    %cst_69 = arith.constant 5.000000e-01 : f32
    %157 = vector.broadcast %cst_69 : f32 to vector<8x128xf32>
    %158 = arith.addf %156, %157 : vector<8x128xf32>
    %159 = vector.extract_strided_slice %143 {offsets = [0, 384], sizes = [8, 128], strides = [1, 1]} : vector<8x512xf32> to vector<8x128xf32>
    %160 = arith.mulf %153, %136 : vector<8x128xf32>
    %161 = arith.mulf %148, %159 : vector<8x128xf32>
    %162 = arith.addf %160, %161 : vector<8x128xf32>
    %163 = math.tanh %162 : vector<8x128xf32>
    %164 = arith.mulf %158, %163 : vector<8x128xf32>
    %c48 = arith.constant 48 : index
    %c0_70 = arith.constant 0 : index
    %165 = vector.load %arg7[%c48, %c0_70] : memref<64x512xf32, #tpu.memory_space<vmem>>, vector<8x512xf32>
    %c0_71 = arith.constant 0 : index
    %c0_72 = arith.constant 0 : index
    %166 = vector.load %arg2[%c0_71, %c0_72] : memref<128x512xf32, #tpu.memory_space<vmem>>, vector<128x512xf32>
    %cst_73 = arith.constant dense<0.000000e+00> : vector<8x512xf32>
    %167 = tpu.matmul %164, %166, %cst_73 {dimension_numbers = #tpu.dot_dimension_numbers<[1], [0], [0], [1], [0, 0, 1, 1], [], []>} : vector<8x128xf32>, vector<128x512xf32>, vector<8x512xf32> -> vector<8x512xf32>
    %168 = arith.addf %165, %167 : vector<8x512xf32>
    %169 = math.tanh %168 : vector<8x512xf32>
    %170 = vector.extract_strided_slice %169 {offsets = [0, 0], sizes = [8, 128], strides = [1, 1]} : vector<8x512xf32> to vector<8x128xf32>
    %cst_74 = arith.constant 5.000000e-01 : f32
    %171 = vector.broadcast %cst_74 : f32 to vector<8x128xf32>
    %172 = arith.mulf %171, %170 : vector<8x128xf32>
    %cst_75 = arith.constant 5.000000e-01 : f32
    %173 = vector.broadcast %cst_75 : f32 to vector<8x128xf32>
    %174 = arith.addf %172, %173 : vector<8x128xf32>
    %175 = vector.extract_strided_slice %169 {offsets = [0, 128], sizes = [8, 128], strides = [1, 1]} : vector<8x512xf32> to vector<8x128xf32>
    %cst_76 = arith.constant 5.000000e-01 : f32
    %176 = vector.broadcast %cst_76 : f32 to vector<8x128xf32>
    %177 = arith.mulf %176, %175 : vector<8x128xf32>
    %cst_77 = arith.constant 5.000000e-01 : f32
    %178 = vector.broadcast %cst_77 : f32 to vector<8x128xf32>
    %179 = arith.addf %177, %178 : vector<8x128xf32>
    %180 = vector.extract_strided_slice %169 {offsets = [0, 256], sizes = [8, 128], strides = [1, 1]} : vector<8x512xf32> to vector<8x128xf32>
    %cst_78 = arith.constant 5.000000e-01 : f32
    %181 = vector.broadcast %cst_78 : f32 to vector<8x128xf32>
    %182 = arith.mulf %181, %180 : vector<8x128xf32>
    %cst_79 = arith.constant 5.000000e-01 : f32
    %183 = vector.broadcast %cst_79 : f32 to vector<8x128xf32>
    %184 = arith.addf %182, %183 : vector<8x128xf32>
    %185 = vector.extract_strided_slice %169 {offsets = [0, 384], sizes = [8, 128], strides = [1, 1]} : vector<8x512xf32> to vector<8x128xf32>
    %186 = arith.mulf %179, %162 : vector<8x128xf32>
    %187 = arith.mulf %174, %185 : vector<8x128xf32>
    %188 = arith.addf %186, %187 : vector<8x128xf32>
    %189 = math.tanh %188 : vector<8x128xf32>
    %190 = arith.mulf %184, %189 : vector<8x128xf32>
    %c56 = arith.constant 56 : index
    %c0_80 = arith.constant 0 : index
    %191 = vector.load %arg7[%c56, %c0_80] : memref<64x512xf32, #tpu.memory_space<vmem>>, vector<8x512xf32>
    %c0_81 = arith.constant 0 : index
    %c0_82 = arith.constant 0 : index
    %192 = vector.load %arg2[%c0_81, %c0_82] : memref<128x512xf32, #tpu.memory_space<vmem>>, vector<128x512xf32>
    %cst_83 = arith.constant dense<0.000000e+00> : vector<8x512xf32>
    %193 = tpu.matmul %190, %192, %cst_83 {dimension_numbers = #tpu.dot_dimension_numbers<[1], [0], [0], [1], [0, 0, 1, 1], [], []>} : vector<8x128xf32>, vector<128x512xf32>, vector<8x512xf32> -> vector<8x512xf32>
    %194 = arith.addf %191, %193 : vector<8x512xf32>
    %195 = math.tanh %194 : vector<8x512xf32>
    %196 = vector.extract_strided_slice %195 {offsets = [0, 0], sizes = [8, 128], strides = [1, 1]} : vector<8x512xf32> to vector<8x128xf32>
    %cst_84 = arith.constant 5.000000e-01 : f32
    %197 = vector.broadcast %cst_84 : f32 to vector<8x128xf32>
    %198 = arith.mulf %197, %196 : vector<8x128xf32>
    %cst_85 = arith.constant 5.000000e-01 : f32
    %199 = vector.broadcast %cst_85 : f32 to vector<8x128xf32>
    %200 = arith.addf %198, %199 : vector<8x128xf32>
    %201 = vector.extract_strided_slice %195 {offsets = [0, 128], sizes = [8, 128], strides = [1, 1]} : vector<8x512xf32> to vector<8x128xf32>
    %cst_86 = arith.constant 5.000000e-01 : f32
    %202 = vector.broadcast %cst_86 : f32 to vector<8x128xf32>
    %203 = arith.mulf %202, %201 : vector<8x128xf32>
    %cst_87 = arith.constant 5.000000e-01 : f32
    %204 = vector.broadcast %cst_87 : f32 to vector<8x128xf32>
    %205 = arith.addf %203, %204 : vector<8x128xf32>
    %206 = vector.extract_strided_slice %195 {offsets = [0, 256], sizes = [8, 128], strides = [1, 1]} : vector<8x512xf32> to vector<8x128xf32>
    %cst_88 = arith.constant 5.000000e-01 : f32
    %207 = vector.broadcast %cst_88 : f32 to vector<8x128xf32>
    %208 = arith.mulf %207, %206 : vector<8x128xf32>
    %cst_89 = arith.constant 5.000000e-01 : f32
    %209 = vector.broadcast %cst_89 : f32 to vector<8x128xf32>
    %210 = arith.addf %208, %209 : vector<8x128xf32>
    %211 = vector.extract_strided_slice %195 {offsets = [0, 384], sizes = [8, 128], strides = [1, 1]} : vector<8x512xf32> to vector<8x128xf32>
    %212 = arith.mulf %205, %188 : vector<8x128xf32>
    %213 = arith.mulf %200, %211 : vector<8x128xf32>
    %214 = arith.addf %212, %213 : vector<8x128xf32>
    %215 = math.tanh %214 : vector<8x128xf32>
    %216 = arith.mulf %210, %215 : vector<8x128xf32>
    %c0_90 = arith.constant 0 : index
    %c0_91 = arith.constant 0 : index
    %217 = vector.load %arg4[%c0_90, %c0_91] : memref<128x3xf32, #tpu.memory_space<vmem>>, vector<128x3xf32>
    %cst_92 = arith.constant dense<0.000000e+00> : vector<8x3xf32>
    %218 = tpu.matmul %216, %217, %cst_92 {dimension_numbers = #tpu.dot_dimension_numbers<[1], [0], [0], [1], [0, 0, 1, 1], [], []>} : vector<8x128xf32>, vector<128x3xf32>, vector<8x3xf32> -> vector<8x3xf32>
    %c0_93 = arith.constant 0 : index
    %c0_94 = arith.constant 0 : index
    %219 = vector.load %arg5[%c0_93, %c0_94] : memref<1x3xf32, #tpu.memory_space<vmem>>, vector<1x3xf32>
    %220 = vector.broadcast %219 : vector<1x3xf32> to vector<8x3xf32>
    %221 = arith.addf %218, %220 : vector<8x3xf32>
    %c0_95 = arith.constant 0 : index
    %c0_96 = arith.constant 0 : index
    %222 = vector.load %arg6[%c0_95, %c0_96] : memref<8x3xf32, #tpu.memory_space<vmem>>, vector<8x3xf32>
    tpu.vector_store %arg6[%c0_95, %c0_96], %221 {strides = array<i32>} : memref<8x3xf32, #tpu.memory_space<vmem>>, vector<8x3xf32>,
    return
  }
}

</mosaic_0001>

<llo_original>
// kernel: tpu_custom_call.1
$region0: #{tpu_custom_call.1}
  #allocation0 [shape = 'u32[]', space=smem, size = 0x4, offset = 0x4, fixed_abs, tag = 'smem constant byte address 0x4 - core index']
  #allocation1 [shape = 'u32[144,128]{1,0:T(1,128)}', space=vmem, size = 0x12000, scoped, tag = 'internal scratch']
  #allocation2 [shape = 'f32[64,512]{1,0:T(8,128)}', space=vmem, size = 0x20000, scoped, tag = 'scratch operand']
  %s0 = inlined_call_operand.vmem [shape: f32[64,3], index: 0, kind: input, shape index: {}]
  %s1 = inlined_call_operand.vmem [shape: f32[3,512], index: 1, kind: input, shape index: {}]
  %s2 = inlined_call_operand.hbm [shape: f32[128,512], index: 2, kind: input, shape index: {}]
  %s3 = inlined_call_operand.vmem [shape: f32[1,512], index: 3, kind: input, shape index: {}]
  %s4 = inlined_call_operand.vmem [shape: f32[128,3], index: 4, kind: input, shape index: {}]
  %s5 = inlined_call_operand.vmem [shape: f32[1,3], index: 5, kind: input, shape index: {}]
  %s6 = inlined_call_operand.vmem [shape: f32[8,3], index: 6, kind: output, shape index: {}]
  %s7 = sld [smem:[#allocation0]]
  $region38: #{tpu_custom_call.1} parent=0
    _
  %s9 = ssub.s32 1, %s7
  %s10 = scalar_select 0, %s9, %s7
  $region1: #{tpu_custom_call.1} parent=0
    #allocation3 [shape = 'u8[262144]{0}', space=vmem, size = 0x40000, scoped, tag = 'input window, operand 2, single buffered']
    #allocation4 [shape = 's32[1]{0}', space=sflag, size = 0x4, scoped, tag = 'scoped memory for tpu_custom_call.1']
    %11 = vsyncpa [#allocation4], 0
    // Predicated region
    $region2: #{tpu_custom_call.1} parent=1 // pred_check
      _
    $region3: #{tpu_custom_call.1} parent=1 // pred_check_branch
      %13 = sbr.rel (0) target = $region5
    $region4: #{tpu_custom_call.1} parent=1 // pred_region
      _
    $region5: #{tpu_custom_call.1} parent=1 // pred_fallthru
      _
    // Predicated region
    $region6: #{tpu_custom_call.1} parent=1 // pred_check
      _
    $region7: #{tpu_custom_call.1} parent=1 // pred_check_branch
      %15 = sbr.rel (0) target = $region9
    $region8: #{tpu_custom_call.1} parent=1 // pred_region
      _
    $region9: #{tpu_custom_call.1} parent=1 // pred_fallthru
      _
    // Predicated region
    $region10: #{tpu_custom_call.1} parent=1 // pred_check
      _
    $region11: #{tpu_custom_call.1} parent=1 // pred_check_branch
      %17 = sbr.rel (0) target = $region13
    $region12: #{tpu_custom_call.1} parent=1 // pred_region
      %s19 = ssub.s32 8192, 8192
      %20 = vsyncadd [#allocation4], %s19
      %s21 = sshll.u32 [#allocation3], 4
      %s22 = int_to_ptr.vmem [resolvable:$true] %s21
      %27 = dma.hbm_to_vmem [thread:$0]  %s2, 8192, %s22, [#allocation4], 512, 512, 32
    $region13: #{tpu_custom_call.1} parent=1 // pred_fallthru
      _
    // Predicated region
    $region14: #{tpu_custom_call.1} parent=1 // pred_check
      _
    $region15: #{tpu_custom_call.1} parent=1 // pred_check_branch
      %29 = sbr.rel (0) target = $region17
    $region16: #{tpu_custom_call.1} parent=1 // pred_region
      _
    $region17: #{tpu_custom_call.1} parent=1 // pred_fallthru
      _
    // Predicated region
    $region18: #{tpu_custom_call.1} parent=1 // pred_check
      _
    $region19: #{tpu_custom_call.1} parent=1 // pred_check_branch
      %31 = sbr.rel (0) target = $region21
    $region20: #{tpu_custom_call.1} parent=1 // pred_region
      _
    $region21: #{tpu_custom_call.1} parent=1 // pred_fallthru
      _
    // Predicated region
    $region22: #{tpu_custom_call.1} parent=1 // pred_check
      _
    $region23: #{tpu_custom_call.1} parent=1 // pred_check_branch
      %33 = sbr.rel (0) target = $region25
    $region24: #{tpu_custom_call.1} parent=1 // pred_region
      _
    $region25: #{tpu_custom_call.1} parent=1 // pred_fallthru
      _
    // Predicated region
    $region26: #{tpu_custom_call.1} parent=1 // pred_check
      _
    $region27: #{tpu_custom_call.1} parent=1 // pred_check_branch
      %35 = sbr.rel (0) target = $region29
    $region28: #{tpu_custom_call.1} parent=1 // pred_region
      %36 = dma.done [#allocation4], 8192
    $region29: #{tpu_custom_call.1} parent=1 // pred_fallthru
      _
    %v37 = vld [vmem:[%s0] sm:$0xff]
    %v38 = vld [vmem:[%s0 + $0x8] sm:$0xff]
    %v39 = vld [vmem:[%s0 + $0x10] sm:$0xff]
    %v40 = vld [vmem:[%s0 + $0x18] sm:$0xff]
    %v41 = vld [vmem:[%s0 + $0x20] sm:$0xff]
    %v42 = vld [vmem:[%s0 + $0x28] sm:$0xff]
    %v43 = vld [vmem:[%s0 + $0x30] sm:$0xff]
    %v44 = vld [vmem:[%s0 + $0x38] sm:$0xff]
    %v45 = vld [vmem:[%s1] sm:$0x77]
    %v46 = vld [vmem:[%s1 + $0x8] sm:$0x77]
    %v47 = vld [vmem:[%s3] sm:$0xf]
    %v49 = vlaneseq
    %v50 = vshrl.u32 %v49, 7
    %v51 = vsub.s32 0, %v50
    %v52 = vrot.slane %v47, %v51
    %v53 = vlaneseq
    %v54 = vshrl.u32 %v53, 7
    %v55 = vsub.s32 1, %v54
    %v56 = vrot.slane %v47, %v55
    %v57 = vlaneseq
    %v58 = vshrl.u32 %v57, 7
    %v59 = vsub.s32 2, %v58
    %v60 = vrot.slane %v47, %v59
    %v61 = vlaneseq
    %v62 = vshrl.u32 %v61, 7
    %v63 = vsub.s32 3, %v62
    %v64 = vrot.slane %v47, %v63
    %v71 = vcombine.high %v45, %v45
    %v72 = vcombine.high %v46, %v46
    %vm73 = vcmask 23552
    %v75 = vsel %vm73, %v37, 0
    %v78 = vsel %vm73, %v38, 0
    %v81 = vsel %vm73, %v39, 0
    %v84 = vsel %vm73, %v40, 0
    %v87 = vsel %vm73, %v41, 0
    %v90 = vsel %vm73, %v42, 0
    %v93 = vsel %vm73, %v43, 0
    %v96 = vsel %vm73, %v44, 0
    %vm98 = vcmask 1042432
    %v99 = vsel %vm98, %v45, 0
    %v101 = vsel %vm98, %v71, 0
    %v103 = vsel %vm98, %v46, 0
    %v105 = vsel %vm98, %v72, 0
    %107 = vmatprep.subr.mxu0 0.0
    %108 = vmatpush1.msra.mxu0 0.0
    %109 = vmatprep.subr.mxu0 0.0
    %110 = vmatpush1.msra.mxu0 0.0
    %111 = vmatprep.subr.mxu0 0.0
    %112 = vmatpush1.msra.mxu0 0.0
    %113 = vmatprep.subr.mxu0 0.0
    %114 = vmatpush1.msra.mxu0 0.0
    %115 = vmatprep.subr.mxu0 0.0
    %116 = vmatpush1.msra.mxu0 0.0
    %117 = vmatprep.subr.mxu0 0.0
    %118 = vmatpush1.msra.mxu0 0.0
    %119 = vmatprep.subr.mxu0 0.0
    %120 = vmatpush1.msra.mxu0 0.0
    %121 = vmatprep.subr.mxu0 0.0
    %122 = vmatpush1.msra.mxu0 0.0
    %123 = vmatprep.subr.mxu0 0.0
    %124 = vmatpush1.msra.mxu0 0.0
    %125 = vmatprep.subr.mxu0 0.0
    %126 = vmatpush1.msra.mxu0 0.0
    %127 = vmatprep.subr.mxu0 0.0
    %128 = vmatpush1.msra.mxu0 0.0
    %129 = vmatprep.subr.mxu0 0.0
    %130 = vmatpush1.msra.mxu0 0.0
    %131 = vmatprep.subr.mxu0 0.0
    %132 = vmatpush1.msra.mxu0 0.0
    %133 = vmatprep.subr.mxu0 0.0
    %134 = vmatpush1.msra.mxu0 0.0
    %135 = vmatprep.subr.mxu0 0.0
    %136 = vmatpush1.msra.mxu0 0.0
    %137 = vmatprep.subr.mxu0 %v101
    %138 = vmatpush1.msra.mxu0 %v99
    %139 = vmatprep.subr.mxu0 0.0
    %140 = vmatpush2.msra.mxu0 0.0
    %141 = vmatprep.subr.mxu0 0.0
    %142 = vmatpush2.msra.mxu0 0.0
    %143 = vmatprep.subr.mxu0 0.0
    %144 = vmatpush2.msra.mxu0 0.0
    %145 = vmatprep.subr.mxu0 0.0
    %146 = vmatpush2.msra.mxu0 0.0
    %147 = vmatprep.subr.mxu0 0.0
    %148 = vmatpush2.msra.mxu0 0.0
    %149 = vmatprep.subr.mxu0 0.0
    %150 = vmatpush2.msra.mxu0 0.0
    %151 = vmatprep.subr.mxu0 0.0
    %152 = vmatpush2.msra.mxu0 0.0
    %153 = vmatprep.subr.mxu0 0.0
    %154 = vmatpush2.msra.mxu0 0.0
    %155 = vmatprep.subr.mxu0 0.0
    %156 = vmatpush2.msra.mxu0 0.0
    %157 = vmatprep.subr.mxu0 0.0
    %158 = vmatpush2.msra.mxu0 0.0
    %159 = vmatprep.subr.mxu0 0.0
    %160 = vmatpush2.msra.mxu0 0.0
    %161 = vmatprep.subr.mxu0 0.0
    %162 = vmatpush2.msra.mxu0 0.0
    %163 = vmatprep.subr.mxu0 0.0
    %164 = vmatpush2.msra.mxu0 0.0
    %165 = vmatprep.subr.mxu0 0.0
    %166 = vmatpush2.msra.mxu0 0.0
    %167 = vmatprep.subr.mxu0 0.0
    %168 = vmatpush2.msra.mxu0 0.0
    %169 = vmatprep.subr.mxu0 0.0
    %170 = vmatpush2.msra.mxu0 0.0
    %171 = vmatprep.mubr.f32.mxu0 0.0
    %172 = vmatmul.mubr.f32.gmra.mxu0 %v75
    %v173 = vpop.f32.mrf.mxu0
    %v174 = vadd.f32 %v52, %v173
    %v175 = vpop.f32.mrf.mxu0
    %v176 = vadd.f32 %v56, %v175
    %177 = vmatprep.mubr.f32.mxu0 0.0
    %178 = vmatmul.mubr.f32.gmra.mxu0 %v78
    %v179 = vpop.f32.mrf.mxu0
    %v180 = vadd.f32 %v52, %v179
    %v181 = vpop.f32.mrf.mxu0
    %v182 = vadd.f32 %v56, %v181
    %183 = vmatprep.mubr.f32.mxu0 0.0
    %184 = vmatmul.mubr.f32.gmra.mxu0 %v81
    %v185 = vpop.f32.mrf.mxu0
    %v186 = vadd.f32 %v52, %v185
    %v187 = vpop.f32.mrf.mxu0
    %v188 = vadd.f32 %v56, %v187
    %189 = vmatprep.mubr.f32.mxu0 0.0
    %190 = vmatmul.mubr.f32.gmra.mxu0 %v84
    %v191 = vpop.f32.mrf.mxu0
    %v192 = vadd.f32 %v52, %v191
    %v193 = vpop.f32.mrf.mxu0
    %v194 = vadd.f32 %v56, %v193
    %195 = vmatprep.mubr.f32.mxu0 0.0
    %196 = vmatmul.mubr.f32.gmra.mxu0 %v87
    %v197 = vpop.f32.mrf.mxu0
    %v198 = vadd.f32 %v52, %v197
    %v199 = vpop.f32.mrf.mxu0
    %v200 = vadd.f32 %v56, %v199
    %201 = vmatprep.mubr.f32.mxu0 0.0
    %202 = vmatmul.mubr.f32.gmra.mxu0 %v90
    %v203 = vpop.f32.mrf.mxu0
    %v204 = vadd.f32 %v52, %v203
    %v205 = vpop.f32.mrf.mxu0
    %v206 = vadd.f32 %v56, %v205
    %207 = vmatprep.mubr.f32.mxu0 0.0
    %208 = vmatmul.mubr.f32.gmra.mxu0 %v93
    %v209 = vpop.f32.mrf.mxu0
    %v210 = vadd.f32 %v52, %v209
    %v211 = vpop.f32.mrf.mxu0
    %v212 = vadd.f32 %v56, %v211
    %213 = vmatprep.mubr.f32.mxu0 0.0
    %214 = vmatmul.mubr.f32.gmra.mxu0 %v96
    %v215 = vpop.f32.mrf.mxu0
    %v216 = vadd.f32 %v52, %v215
    %v217 = vpop.f32.mrf.mxu0
    %v218 = vadd.f32 %v56, %v217
    %219 = vdwg.mxu0
    %220 = vmatprep.subr.mxu0 0.0
    %221 = vmatpush1.msra.mxu0 0.0
    %222 = vmatprep.subr.mxu0 0.0
    %223 = vmatpush1.msra.mxu0 0.0
    %224 = vmatprep.subr.mxu0 0.0
    %225 = vmatpush1.msra.mxu0 0.0
    %226 = vmatprep.subr.mxu0 0.0
    %227 = vmatpush1.msra.mxu0 0.0
    %228 = vmatprep.subr.mxu0 0.0
    %229 = vmatpush1.msra.mxu0 0.0
    %230 = vmatprep.subr.mxu0 0.0
    %231 = vmatpush1.msra.mxu0 0.0
    %232 = vmatprep.subr.mxu0 0.0
    %233 = vmatpush1.msra.mxu0 0.0
    %234 = vmatprep.subr.mxu0 0.0
    %235 = vmatpush1.msra.mxu0 0.0
    %236 = vmatprep.subr.mxu0 0.0
    %237 = vmatpush1.msra.mxu0 0.0
    %238 = vmatprep.subr.mxu0 0.0
    %239 = vmatpush1.msra.mxu0 0.0
    %240 = vmatprep.subr.mxu0 0.0
    %241 = vmatpush1.msra.mxu0 0.0
    %242 = vmatprep.subr.mxu0 0.0
    %243 = vmatpush1.msra.mxu0 0.0
    %244 = vmatprep.subr.mxu0 0.0
    %245 = vmatpush1.msra.mxu0 0.0
    %246 = vmatprep.subr.mxu0 0.0
    %247 = vmatpush1.msra.mxu0 0.0
    %248 = vmatprep.subr.mxu0 0.0
    %249 = vmatpush1.msra.mxu0 0.0
    %250 = vmatprep.subr.mxu0 %v105
    %251 = vmatpush1.msra.mxu0 %v103
    %252 = vmatprep.subr.mxu0 0.0
    %253 = vmatpush2.msra.mxu0 0.0
    %254 = vmatprep.subr.mxu0 0.0
    %255 = vmatpush2.msra.mxu0 0.0
    %256 = vmatprep.subr.mxu0 0.0
    %257 = vmatpush2.msra.mxu0 0.0
    %258 = vmatprep.subr.mxu0 0.0
    %259 = vmatpush2.msra.mxu0 0.0
    %260 = vmatprep.subr.mxu0 0.0
    %261 = vmatpush2.msra.mxu0 0.0
    %262 = vmatprep.subr.mxu0 0.0
    %263 = vmatpush2.msra.mxu0 0.0
    %264 = vmatprep.subr.mxu0 0.0
    %265 = vmatpush2.msra.mxu0 0.0
    %266 = vmatprep.subr.mxu0 0.0
    %267 = vmatpush2.msra.mxu0 0.0
    %268 = vmatprep.subr.mxu0 0.0
    %269 = vmatpush2.msra.mxu0 0.0
    %270 = vmatprep.subr.mxu0 0.0
    %271 = vmatpush2.msra.mxu0 0.0
    %272 = vmatprep.subr.mxu0 0.0
    %273 = vmatpush2.msra.mxu0 0.0
    %274 = vmatprep.subr.mxu0 0.0
    %275 = vmatpush2.msra.mxu0 0.0
    %276 = vmatprep.subr.mxu0 0.0
    %277 = vmatpush2.msra.mxu0 0.0
    %278 = vmatprep.subr.mxu0 0.0
    %279 = vmatpush2.msra.mxu0 0.0
    %280 = vmatprep.subr.mxu0 0.0
    %281 = vmatpush2.msra.mxu0 0.0
    %282 = vmatprep.subr.mxu0 0.0
    %283 = vmatpush2.msra.mxu0 0.0
    %284 = vmatprep.mubr.f32.mxu0 0.0
    %285 = vmatmul.mubr.f32.gmra.mxu0 %v75
    %v286 = vpop.f32.mrf.mxu0
    %v287 = vadd.f32 %v60, %v286
    %v288 = vpop.f32.mrf.mxu0
    %v289 = vadd.f32 %v64, %v288
    %290 = vmatprep.mubr.f32.mxu0 0.0
    %291 = vmatmul.mubr.f32.gmra.mxu0 %v78
    %v292 = vpop.f32.mrf.mxu0
    %v293 = vadd.f32 %v60, %v292
    %v294 = vpop.f32.mrf.mxu0
    %v295 = vadd.f32 %v64, %v294
    %296 = vmatprep.mubr.f32.mxu0 0.0
    %297 = vmatmul.mubr.f32.gmra.mxu0 %v81
    %v298 = vpop.f32.mrf.mxu0
    %v299 = vadd.f32 %v60, %v298
    %v300 = vpop.f32.mrf.mxu0
    %v301 = vadd.f32 %v64, %v300
    %302 = vmatprep.mubr.f32.mxu0 0.0
    %303 = vmatmul.mubr.f32.gmra.mxu0 %v84
    %v304 = vpop.f32.mrf.mxu0
    %v305 = vadd.f32 %v60, %v304
    %v306 = vpop.f32.mrf.mxu0
    %v307 = vadd.f32 %v64, %v306
    %308 = vmatprep.mubr.f32.mxu0 0.0
    %309 = vmatmul.mubr.f32.gmra.mxu0 %v87
    %v310 = vpop.f32.mrf.mxu0
    %v311 = vadd.f32 %v60, %v310
    %v312 = vpop.f32.mrf.mxu0
    %v313 = vadd.f32 %v64, %v312
    %314 = vmatprep.mubr.f32.mxu0 0.0
    %315 = vmatmul.mubr.f32.gmra.mxu0 %v90
    %v316 = vpop.f32.mrf.mxu0
    %v317 = vadd.f32 %v60, %v316
    %v318 = vpop.f32.mrf.mxu0
    %v319 = vadd.f32 %v64, %v318
    %320 = vmatprep.mubr.f32.mxu0 0.0
    %321 = vmatmul.mubr.f32.gmra.mxu0 %v93
    %v322 = vpop.f32.mrf.mxu0
    %v323 = vadd.f32 %v60, %v322
    %v324 = vpop.f32.mrf.mxu0
    %v325 = vadd.f32 %v64, %v324
    %326 = vmatprep.mubr.f32.mxu0 0.0
    %327 = vmatmul.mubr.f32.gmra.mxu0 %v96
    %v328 = vpop.f32.mrf.mxu0
    %v329 = vadd.f32 %v60, %v328
    %v330 = vpop.f32.mrf.mxu0
    %v331 = vadd.f32 %v64, %v330
    %332 = vdwg.mxu0
    %333 = vst [vmem:[#allocation2] sm:$0xff] %v174
    %334 = vst [vmem:[#allocation2 + $0x8] sm:$0xff] %v176
    %335 = vst [vmem:[#allocation2 + $0x10] sm:$0xff] %v287
    %336 = vst [vmem:[#allocation2 + $0x18] sm:$0xff] %v289
    %337 = vst [vmem:[#allocation2 + $0x20] sm:$0xff] %v180
    %338 = vst [vmem:[#allocation2 + $0x28] sm:$0xff] %v182
    %339 = vst [vmem:[#allocation2 + $0x30] sm:$0xff] %v293
    %340 = vst [vmem:[#allocation2 + $0x38] sm:$0xff] %v295
    %341 = vst [vmem:[#allocation2 + $0x40] sm:$0xff] %v186
    %342 = vst [vmem:[#allocation2 + $0x48] sm:$0xff] %v188
    %343 = vst [vmem:[#allocation2 + $0x50] sm:$0xff] %v299
    %344 = vst [vmem:[#allocation2 + $0x58] sm:$0xff] %v301
    %345 = vst [vmem:[#allocation2 + $0x60] sm:$0xff] %v192
    %346 = vst [vmem:[#allocation2 + $0x68] sm:$0xff] %v194
    %347 = vst [vmem:[#allocation2 + $0x70] sm:$0xff] %v305
    %348 = vst [vmem:[#allocation2 + $0x78] sm:$0xff] %v307
    %349 = vst [vmem:[#allocation2 + $0x80] sm:$0xff] %v198
    %350 = vst [vmem:[#allocation2 + $0x88] sm:$0xff] %v200
    %351 = vst [vmem:[#allocation2 + $0x90] sm:$0xff] %v311
    %352 = vst [vmem:[#allocation2 + $0x98] sm:$0xff] %v313
    %353 = vst [vmem:[#allocation2 + $0xa0] sm:$0xff] %v204
    %354 = vst [vmem:[#allocation2 + $0xa8] sm:$0xff] %v206
    %355 = vst [vmem:[#allocation2 + $0xb0] sm:$0xff] %v317
    %356 = vst [vmem:[#allocation2 + $0xb8] sm:$0xff] %v319
    %357 = vst [vmem:[#allocation2 + $0xc0] sm:$0xff] %v210
    %358 = vst [vmem:[#allocation2 + $0xc8] sm:$0xff] %v212
    %359 = vst [vmem:[#allocation2 + $0xd0] sm:$0xff] %v323
    %360 = vst [vmem:[#allocation2 + $0xd8] sm:$0xff] %v325
    %361 = vst [vmem:[#allocation2 + $0xe0] sm:$0xff] %v216
    %362 = vst [vmem:[#allocation2 + $0xe8] sm:$0xff] %v218
    %363 = vst [vmem:[#allocation2 + $0xf0] sm:$0xff] %v329
    %364 = vst [vmem:[#allocation2 + $0xf8] sm:$0xff] %v331
    %v365 = vld [vmem:[#allocation2] sm:$0xff]
    %v366 = vld [vmem:[#allocation2 + $0x8] sm:$0xff]
    %v367 = vld [vmem:[#allocation2 + $0x10] sm:$0xff]
    %v368 = vld [vmem:[#allocation2 + $0x18] sm:$0xff]
    %v369 = vld [vmem:[#allocation3] sm:$0xff]
    %v370 = vld [vmem:[#allocation3 + $0x8] sm:$0xff]
    %v371 = vld [vmem:[#allocation3 + $0x10] sm:$0xff]
    %v372 = vld [vmem:[#allocation3 + $0x18] sm:$0xff]
    %v373 = vld [vmem:[#allocation3 + $0x20] sm:$0xff]
    %v374 = vld [vmem:[#allocation3 + $0x28] sm:$0xff]
    %v375 = vld [vmem:[#allocation3 + $0x30] sm:$0xff]
    %v376 = vld [vmem:[#allocation3 + $0x38] sm:$0xff]
    %v377 = vld [vmem:[#allocation3 + $0x40] sm:$0xff]
    %v378 = vld [vmem:[#allocation3 + $0x48] sm:$0xff]
    %v379 = vld [vmem:[#allocation3 + $0x50] sm:$0xff]
    %v380 = vld [vmem:[#allocation3 + $0x58] sm:$0xff]
    %v381 = vld [vmem:[#allocation3 + $0x60] sm:$0xff]
    %v382 = vld [vmem:[#allocation3 + $0x68] sm:$0xff]
    %v383 = vld [vmem:[#allocation3 + $0x70] sm:$0xff]
    %v384 = vld [vmem:[#allocation3 + $0x78] sm:$0xff]
    %v385 = vld [vmem:[#allocation3 + $0x80] sm:$0xff]
    %v386 = vld [vmem:[#allocation3 + $0x88] sm:$0xff]
    %v387 = vld [vmem:[#allocation3 + $0x90] sm:$0xff]
    %v388 = vld [vmem:[#allocation3 + $0x98] sm:$0xff]
    %v389 = vld [vmem:[#allocation3 + $0xa0] sm:$0xff]
    %v390 = vld [vmem:[#allocation3 + $0xa8] sm:$0xff]
    %v391 = vld [vmem:[#allocation3 + $0xb0] sm:$0xff]
    %v392 = vld [vmem:[#allocation3 + $0xb8] sm:$0xff]
    %v393 = vld [vmem:[#allocation3 + $0xc0] sm:$0xff]
    %v394 = vld [vmem:[#allocation3 + $0xc8] sm:$0xff]
    %v395 = vld [vmem:[#allocation3 + $0xd0] sm:$0xff]
    %v396 = vld [vmem:[#allocation3 + $0xd8] sm:$0xff]
    %v397 = vld [vmem:[#allocation3 + $0xe0] sm:$0xff]
    %v398 = vld [vmem:[#allocation3 + $0xe8] sm:$0xff]
    %v399 = vld [vmem:[#allocation3 + $0xf0] sm:$0xff]
    %v400 = vld [vmem:[#allocation3 + $0xf8] sm:$0xff]
    %v401 = vld [vmem:[#allocation3 + $0x100] sm:$0xff]
    %v402 = vld [vmem:[#allocation3 + $0x108] sm:$0xff]
    %v403 = vld [vmem:[#allocation3 + $0x110] sm:$0xff]
    %v404 = vld [vmem:[#allocation3 + $0x118] sm:$0xff]
    %v405 = vld [vmem:[#allocation3 + $0x120] sm:$0xff]
    %v406 = vld [vmem:[#allocation3 + $0x128] sm:$0xff]
    %v407 = vld [vmem:[#allocation3 + $0x130] sm:$0xff]
    %v408 = vld [vmem:[#allocation3 + $0x138] sm:$0xff]
    %v409 = vld [vmem:[#allocation3 + $0x140] sm:$0xff]
    %v410 = vld [vmem:[#allocation3 + $0x148] sm:$0xff]
    %v411 = vld [vmem:[#allocation3 + $0x150] sm:$0xff]
    %v412 = vld [vmem:[#allocation3 + $0x158] sm:$0xff]
    %v413 = vld [vmem:[#allocation3 + $0x160] sm:$0xff]
    %v414 = vld [vmem:[#allocation3 + $0x168] sm:$0xff]
    %v415 = vld [vmem:[#allocation3 + $0x170] sm:$0xff]
    %v416 = vld [vmem:[#allocation3 + $0x178] sm:$0xff]
    %v417 = vld [vmem:[#allocation3 + $0x180] sm:$0xff]
    %v418 = vld [vmem:[#allocation3 + $0x188] sm:$0xff]
    %v419 = vld [vmem:[#allocation3 + $0x190] sm:$0xff]
    %v420 = vld [vmem:[#allocation3 + $0x198] sm:$0xff]
    %v421 = vld [vmem:[#allocation3 + $0x1a0] sm:$0xff]
    %v422 = vld [vmem:[#allocation3 + $0x1a8] sm:$0xff]
    %v423 = vld [vmem:[#allocation3 + $0x1b0] sm:$0xff]
    %v424 = vld [vmem:[#allocation3 + $0x1b8] sm:$0xff]
    %v425 = vld [vmem:[#allocation3 + $0x1c0] sm:$0xff]
    %v426 = vld [vmem:[#allocation3 + $0x1c8] sm:$0xff]
    %v427 = vld [vmem:[#allocation3 + $0x1d0] sm:$0xff]
    %v428 = vld [vmem:[#allocation3 + $0x1d8] sm:$0xff]
    %v429 = vld [vmem:[#allocation3 + $0x1e0] sm:$0xff]
    %v430 = vld [vmem:[#allocation3 + $0x1e8] sm:$0xff]
    %v431 = vld [vmem:[#allocation3 + $0x1f0] sm:$0xff]
    %v432 = vld [vmem:[#allocation3 + $0x1f8] sm:$0xff]
    %433 = vmatprep.subr.mxu0 %v430
    %434 = vmatpush1.msra.mxu0 %v429
    %435 = vmatprep.subr.mxu0 %v426
    %436 = vmatpush1.msra.mxu0 %v425
    %437 = vmatprep.subr.mxu0 %v422
    %438 = vmatpush1.msra.mxu0 %v421
    %439 = vmatprep.subr.mxu0 %v418
    %440 = vmatpush1.msra.mxu0 %v417
    %441 = vmatprep.subr.mxu0 %v414
    %442 = vmatpush1.msra.mxu0 %v413
    %443 = vmatprep.subr.mxu0 %v410
    %444 = vmatpush1.msra.mxu0 %v409
    %445 = vmatprep.subr.mxu0 %v406
    %446 = vmatpush1.msra.mxu0 %v405
    %447 = vmatprep.subr.mxu0 %v402
    %448 = vmatpush1.msra.mxu0 %v401
    %449 = vmatprep.subr.mxu0 %v398
    %450 = vmatpush1.msra.mxu0 %v397
    %451 = vmatprep.subr.mxu0 %v394
    %452 = vmatpush1.msra.mxu0 %v393
    %453 = vmatprep.subr.mxu0 %v390
    %454 = vmatpush1.msra.mxu0 %v389
    %455 = vmatprep.subr.mxu0 %v386
    %456 = vmatpush1.msra.mxu0 %v385
    %457 = vmatprep.subr.mxu0 %v382
    %458 = vmatpush1.msra.mxu0 %v381
    %459 = vmatprep.subr.mxu0 %v378
    %460 = vmatpush1.msra.mxu0 %v377
    %461 = vmatprep.subr.mxu0 %v374
    %462 = vmatpush1.msra.mxu0 %v373
    %463 = vmatprep.subr.mxu0 %v370
    %464 = vmatpush1.msra.mxu0 %v369
    %465 = vmatprep.subr.mxu0 0.0
    %466 = vmatpush2.msra.mxu0 0.0
    %467 = vmatprep.subr.mxu0 0.0
    %468 = vmatpush2.msra.mxu0 0.0
    %469 = vmatprep.subr.mxu0 0.0
    %470 = vmatpush2.msra.mxu0 0.0
    %471 = vmatprep.subr.mxu0 0.0
    %472 = vmatpush2.msra.mxu0 0.0
    %473 = vmatprep.subr.mxu0 0.0
    %474 = vmatpush2.msra.mxu0 0.0
    %475 = vmatprep.subr.mxu0 0.0
    %476 = vmatpush2.msra.mxu0 0.0
    %477 = vmatprep.subr.mxu0 0.0
    %478 = vmatpush2.msra.mxu0 0.0
    %479 = vmatprep.subr.mxu0 0.0
    %480 = vmatpush2.msra.mxu0 0.0
    %481 = vmatprep.subr.mxu0 0.0
    %482 = vmatpush2.msra.mxu0 0.0
    %483 = vmatprep.subr.mxu0 0.0
    %484 = vmatpush2.msra.mxu0 0.0
    %485 = vmatprep.subr.mxu0 0.0
    %486 = vmatpush2.msra.mxu0 0.0
    %487 = vmatprep.subr.mxu0 0.0
    %488 = vmatpush2.msra.mxu0 0.0
    %489 = vmatprep.subr.mxu0 0.0
    %490 = vmatpush2.msra.mxu0 0.0
    %491 = vmatprep.subr.mxu0 0.0
    %492 = vmatpush2.msra.mxu0 0.0
    %493 = vmatprep.subr.mxu0 0.0
    %494 = vmatpush2.msra.mxu0 0.0
    %495 = vmatprep.subr.mxu0 0.0
    %496 = vmatpush2.msra.mxu0 0.0
    %497 = vmatprep.mubr.f32.mxu0 0.0
    %498 = vmatmul.mubr.f32.gmra.mxu0 0.0
    %v499 = vpop.f32.mrf.mxu0
    %v500 = vadd.f32 0.0, %v499
    %v501 = vpop.f32.mrf.mxu0
    %v502 = vadd.f32 0.0, %v501
    %503 = vdwg.mxu0
    %504 = vmatprep.subr.mxu0 %v432
    %505 = vmatpush1.msra.mxu0 %v431
    %506 = vmatprep.subr.mxu0 %v428
    %507 = vmatpush1.msra.mxu0 %v427
    %508 = vmatprep.subr.mxu0 %v424
    %509 = vmatpush1.msra.mxu0 %v423
    %510 = vmatprep.subr.mxu0 %v420
    %511 = vmatpush1.msra.mxu0 %v419
    %512 = vmatprep.subr.mxu0 %v416
    %513 = vmatpush1.msra.mxu0 %v415
    %514 = vmatprep.subr.mxu0 %v412
    %515 = vmatpush1.msra.mxu0 %v411
    %516 = vmatprep.subr.mxu0 %v408
    %517 = vmatpush1.msra.mxu0 %v407
    %518 = vmatprep.subr.mxu0 %v404
    %519 = vmatpush1.msra.mxu0 %v403
    %520 = vmatprep.subr.mxu0 %v400
    %521 = vmatpush1.msra.mxu0 %v399
    %522 = vmatprep.subr.mxu0 %v396
    %523 = vmatpush1.msra.mxu0 %v395
    %524 = vmatprep.subr.mxu0 %v392
    %525 = vmatpush1.msra.mxu0 %v391
    %526 = vmatprep.subr.mxu0 %v388
    %527 = vmatpush1.msra.mxu0 %v387
    %528 = vmatprep.subr.mxu0 %v384
    %529 = vmatpush1.msra.mxu0 %v383
    %530 = vmatprep.subr.mxu0 %v380
    %531 = vmatpush1.msra.mxu0 %v379
    %532 = vmatprep.subr.mxu0 %v376
    %533 = vmatpush1.msra.mxu0 %v375
    %534 = vmatprep.subr.mxu0 %v372
    %535 = vmatpush1.msra.mxu0 %v371
    %536 = vmatprep.subr.mxu0 0.0
    %537 = vmatpush2.msra.mxu0 0.0
    %538 = vmatprep.subr.mxu0 0.0
    %539 = vmatpush2.msra.mxu0 0.0
    %540 = vmatprep.subr.mxu0 0.0
    %541 = vmatpush2.msra.mxu0 0.0
    %542 = vmatprep.subr.mxu0 0.0
    %543 = vmatpush2.msra.mxu0 0.0
    %544 = vmatprep.subr.mxu0 0.0
    %545 = vmatpush2.msra.mxu0 0.0
    %546 = vmatprep.subr.mxu0 0.0
    %547 = vmatpush2.msra.mxu0 0.0
    %548 = vmatprep.subr.mxu0 0.0
    %549 = vmatpush2.msra.mxu0 0.0
    %550 = vmatprep.subr.mxu0 0.0
    %551 = vmatpush2.msra.mxu0 0.0
    %552 = vmatprep.subr.mxu0 0.0
    %553 = vmatpush2.msra.mxu0 0.0
    %554 = vmatprep.subr.mxu0 0.0
    %555 = vmatpush2.msra.mxu0 0.0
    %556 = vmatprep.subr.mxu0 0.0
    %557 = vmatpush2.msra.mxu0 0.0
    %558 = vmatprep.subr.mxu0 0.0
    %559 = vmatpush2.msra.mxu0 0.0
    %560 = vmatprep.subr.mxu0 0.0
    %561 = vmatpush2.msra.mxu0 0.0
    %562 = vmatprep.subr.mxu0 0.0
    %563 = vmatpush2.msra.mxu0 0.0
    %564 = vmatprep.subr.mxu0 0.0
    %565 = vmatpush2.msra.mxu0 0.0
    %566 = vmatprep.subr.mxu0 0.0
    %567 = vmatpush2.msra.mxu0 0.0
    %568 = vmatprep.mubr.f32.mxu0 0.0
    %569 = vmatmul.mubr.f32.gmra.mxu0 0.0
    %v570 = vpop.f32.mrf.mxu0
    %v571 = vadd.f32 0.0, %v570
    %v572 = vpop.f32.mrf.mxu0
    %v573 = vadd.f32 0.0, %v572
    %574 = vdwg.mxu0
    %v575 = vadd.f32 %v365, %v500
    %v576 = vadd.f32 %v366, %v502
    %v577 = vadd.f32 %v367, %v571
    %v578 = vadd.f32 %v368, %v573
    %v579 = vtanh.pop %v575
    %v580 = vtanh.pop %v576
    %v581 = vtanh.pop %v577
    %v582 = vtanh.pop %v578
    %v583 = vmul.f32 %v579, 0.5
    %v584 = vadd.f32 %v583, 0.5
    %v585 = vmul.f32 %v580, 0.5
    %v586 = vadd.f32 %v585, 0.5
    %v587 = vmul.f32 %v581, 0.5
    %v588 = vadd.f32 %v587, 0.5
    %v589 = vmul.f32 %v586, 0.0
    %v590 = vmul.f32 %v584, %v582
    %v591 = vadd.f32 %v589, %v590
    %v592 = vtanh.pop %v591
    %v593 = vmul.f32 %v588, %v592
    %v594 = vld [vmem:[#allocation2 + $0x20] sm:$0xff]
    %v595 = vld [vmem:[#allocation2 + $0x28] sm:$0xff]
    %v596 = vld [vmem:[#allocation2 + $0x30] sm:$0xff]
    %v597 = vld [vmem:[#allocation2 + $0x38] sm:$0xff]
    %598 = vmatprep.subr.mxu0 %v430
    %599 = vmatpush1.msra.mxu0 %v429
    %600 = vmatprep.subr.mxu0 %v426
    %601 = vmatpush1.msra.mxu0 %v425
    %602 = vmatprep.subr.mxu0 %v422
    %603 = vmatpush1.msra.mxu0 %v421
    %604 = vmatprep.subr.mxu0 %v418
    %605 = vmatpush1.msra.mxu0 %v417
    %606 = vmatprep.subr.mxu0 %v414
    %607 = vmatpush1.msra.mxu0 %v413
    %608 = vmatprep.subr.mxu0 %v410
    %609 = vmatpush1.msra.mxu0 %v409
    %610 = vmatprep.subr.mxu0 %v406
    %611 = vmatpush1.msra.mxu0 %v405
    %612 = vmatprep.subr.mxu0 %v402
    %613 = vmatpush1.msra.mxu0 %v401
    %614 = vmatprep.subr.mxu0 %v398
    %615 = vmatpush1.msra.mxu0 %v397
    %616 = vmatprep.subr.mxu0 %v394
    %617 = vmatpush1.msra.mxu0 %v393
    %618 = vmatprep.subr.mxu0 %v390
    %619 = vmatpush1.msra.mxu0 %v389
    %620 = vmatprep.subr.mxu0 %v386
    %621 = vmatpush1.msra.mxu0 %v385
    %622 = vmatprep.subr.mxu0 %v382
    %623 = vmatpush1.msra.mxu0 %v381
    %624 = vmatprep.subr.mxu0 %v378
    %625 = vmatpush1.msra.mxu0 %v377
    %626 = vmatprep.subr.mxu0 %v374
    %627 = vmatpush1.msra.mxu0 %v373
    %628 = vmatprep.subr.mxu0 %v370
    %629 = vmatpush1.msra.mxu0 %v369
    %630 = vmatprep.subr.mxu0 0.0
    %631 = vmatpush2.msra.mxu0 0.0
    %632 = vmatprep.subr.mxu0 0.0
    %633 = vmatpush2.msra.mxu0 0.0
    %634 = vmatprep.subr.mxu0 0.0
    %635 = vmatpush2.msra.mxu0 0.0
    %636 = vmatprep.subr.mxu0 0.0
    %637 = vmatpush2.msra.mxu0 0.0
    %638 = vmatprep.subr.mxu0 0.0
    %639 = vmatpush2.msra.mxu0 0.0
    %640 = vmatprep.subr.mxu0 0.0
    %641 = vmatpush2.msra.mxu0 0.0
    %642 = vmatprep.subr.mxu0 0.0
    %643 = vmatpush2.msra.mxu0 0.0
    %644 = vmatprep.subr.mxu0 0.0
    %645 = vmatpush2.msra.mxu0 0.0
    %646 = vmatprep.subr.mxu0 0.0
    %647 = vmatpush2.msra.mxu0 0.0
    %648 = vmatprep.subr.mxu0 0.0
    %649 = vmatpush2.msra.mxu0 0.0
    %650 = vmatprep.subr.mxu0 0.0
    %651 = vmatpush2.msra.mxu0 0.0
    %652 = vmatprep.subr.mxu0 0.0
    %653 = vmatpush2.msra.mxu0 0.0
    %654 = vmatprep.subr.mxu0 0.0
    %655 = vmatpush2.msra.mxu0 0.0
    %656 = vmatprep.subr.mxu0 0.0
    %657 = vmatpush2.msra.mxu0 0.0
    %658 = vmatprep.subr.mxu0 0.0
    %659 = vmatpush2.msra.mxu0 0.0
    %660 = vmatprep.subr.mxu0 0.0
    %661 = vmatpush2.msra.mxu0 0.0
    %662 = vmatprep.mubr.f32.mxu0 0.0
    %663 = vmatmul.mubr.f32.gmra.mxu0 %v593
    %v664 = vpop.f32.mrf.mxu0
    %v665 = vadd.f32 0.0, %v664
    %v666 = vpop.f32.mrf.mxu0
    %v667 = vadd.f32 0.0, %v666
    %668 = vdwg.mxu0
    %669 = vmatprep.subr.mxu0 %v432
    %670 = vmatpush1.msra.mxu0 %v431
    %671 = vmatprep.subr.mxu0 %v428
    %672 = vmatpush1.msra.mxu0 %v427
    %673 = vmatprep.subr.mxu0 %v424
    %674 = vmatpush1.msra.mxu0 %v423
    %675 = vmatprep.subr.mxu0 %v420
    %676 = vmatpush1.msra.mxu0 %v419
    %677 = vmatprep.subr.mxu0 %v416
    %678 = vmatpush1.msra.mxu0 %v415
    %679 = vmatprep.subr.mxu0 %v412
    %680 = vmatpush1.msra.mxu0 %v411
    %681 = vmatprep.subr.mxu0 %v408
    %682 = vmatpush1.msra.mxu0 %v407
    %683 = vmatprep.subr.mxu0 %v404
    %684 = vmatpush1.msra.mxu0 %v403
    %685 = vmatprep.subr.mxu0 %v400
    %686 = vmatpush1.msra.mxu0 %v399
    %687 = vmatprep.subr.mxu0 %v396
    %688 = vmatpush1.msra.mxu0 %v395
    %689 = vmatprep.subr.mxu0 %v392
    %690 = vmatpush1.msra.mxu0 %v391
    %691 = vmatprep.subr.mxu0 %v388
    %692 = vmatpush1.msra.mxu0 %v387
    %693 = vmatprep.subr.mxu0 %v384
    %694 = vmatpush1.msra.mxu0 %v383
    %695 = vmatprep.subr.mxu0 %v380
    %696 = vmatpush1.msra.mxu0 %v379
    %697 = vmatprep.subr.mxu0 %v376
    %698 = vmatpush1.msra.mxu0 %v375
    %699 = vmatprep.subr.mxu0 %v372
    %700 = vmatpush1.msra.mxu0 %v371
    %701 = vmatprep.subr.mxu0 0.0
    %702 = vmatpush2.msra.mxu0 0.0
    %703 = vmatprep.subr.mxu0 0.0
    %704 = vmatpush2.msra.mxu0 0.0
    %705 = vmatprep.subr.mxu0 0.0
    %706 = vmatpush2.msra.mxu0 0.0
    %707 = vmatprep.subr.mxu0 0.0
    %708 = vmatpush2.msra.mxu0 0.0
    %709 = vmatprep.subr.mxu0 0.0
    %710 = vmatpush2.msra.mxu0 0.0
    %711 = vmatprep.subr.mxu0 0.0
    %712 = vmatpush2.msra.mxu0 0.0
    %713 = vmatprep.subr.mxu0 0.0
    %714 = vmatpush2.msra.mxu0 0.0
    %715 = vmatprep.subr.mxu0 0.0
    %716 = vmatpush2.msra.mxu0 0.0
    %717 = vmatprep.subr.mxu0 0.0
    %718 = vmatpush2.msra.mxu0 0.0
    %719 = vmatprep.subr.mxu0 0.0
    %720 = vmatpush2.msra.mxu0 0.0
    %721 = vmatprep.subr.mxu0 0.0
    %722 = vmatpush2.msra.mxu0 0.0
    %723 = vmatprep.subr.mxu0 0.0
    %724 = vmatpush2.msra.mxu0 0.0
    %725 = vmatprep.subr.mxu0 0.0
    %726 = vmatpush2.msra.mxu0 0.0
    %727 = vmatprep.subr.mxu0 0.0
    %728 = vmatpush2.msra.mxu0 0.0
    %729 = vmatprep.subr.mxu0 0.0
    %730 = vmatpush2.msra.mxu0 0.0
    %731 = vmatprep.subr.mxu0 0.0
    %732 = vmatpush2.msra.mxu0 0.0
    %733 = vmatprep.mubr.f32.mxu0 0.0
    %734 = vmatmul.mubr.f32.gmra.mxu0 %v593
    %v735 = vpop.f32.mrf.mxu0
    %v736 = vadd.f32 0.0, %v735
    %v737 = vpop.f32.mrf.mxu0
    %v738 = vadd.f32 0.0, %v737
    %739 = vdwg.mxu0
    %v740 = vadd.f32 %v594, %v665
    %v741 = vadd.f32 %v595, %v667
    %v742 = vadd.f32 %v596, %v736
    %v743 = vadd.f32 %v597, %v738
    %v744 = vtanh.pop %v740
    %v745 = vtanh.pop %v741
    %v746 = vtanh.pop %v742
    %v747 = vtanh.pop %v743
    %v748 = vmul.f32 %v744, 0.5
    %v749 = vadd.f32 %v748, 0.5
    %v750 = vmul.f32 %v745, 0.5
    %v751 = vadd.f32 %v750, 0.5
    %v752 = vmul.f32 %v746, 0.5
    %v753 = vadd.f32 %v752, 0.5
    %v754 = vmul.f32 %v751, %v591
    %v755 = vmul.f32 %v749, %v747
    %v756 = vadd.f32 %v754, %v755
    %v757 = vtanh.pop %v756
    %v758 = vmul.f32 %v753, %v757
    %v759 = vld [vmem:[#allocation2 + $0x40] sm:$0xff]
    %v760 = vld [vmem:[#allocation2 + $0x48] sm:$0xff]
    %v761 = vld [vmem:[#allocation2 + $0x50] sm:$0xff]
    %v762 = vld [vmem:[#allocation2 + $0x58] sm:$0xff]
    %763 = vmatprep.subr.mxu0 %v430
    %764 = vmatpush1.msra.mxu0 %v429
    %765 = vmatprep.subr.mxu0 %v426
    %766 = vmatpush1.msra.mxu0 %v425
    %767 = vmatprep.subr.mxu0 %v422
    %768 = vmatpush1.msra.mxu0 %v421
    %769 = vmatprep.subr.mxu0 %v418
    %770 = vmatpush1.msra.mxu0 %v417
    %771 = vmatprep.subr.mxu0 %v414
    %772 = vmatpush1.msra.mxu0 %v413
    %773 = vmatprep.subr.mxu0 %v410
    %774 = vmatpush1.msra.mxu0 %v409
    %775 = vmatprep.subr.mxu0 %v406
    %776 = vmatpush1.msra.mxu0 %v405
    %777 = vmatprep.subr.mxu0 %v402
    %778 = vmatpush1.msra.mxu0 %v401
    %779 = vmatprep.subr.mxu0 %v398
    %780 = vmatpush1.msra.mxu0 %v397
    %781 = vmatprep.subr.mxu0 %v394
    %782 = vmatpush1.msra.mxu0 %v393
    %783 = vmatprep.subr.mxu0 %v390
    %784 = vmatpush1.msra.mxu0 %v389
    %785 = vmatprep.subr.mxu0 %v386
    %786 = vmatpush1.msra.mxu0 %v385
    %787 = vmatprep.subr.mxu0 %v382
    %788 = vmatpush1.msra.mxu0 %v381
    %789 = vmatprep.subr.mxu0 %v378
    %790 = vmatpush1.msra.mxu0 %v377
    %791 = vmatprep.subr.mxu0 %v374
    %792 = vmatpush1.msra.mxu0 %v373
    %793 = vmatprep.subr.mxu0 %v370
    %794 = vmatpush1.msra.mxu0 %v369
    %795 = vmatprep.subr.mxu0 0.0
    %796 = vmatpush2.msra.mxu0 0.0
    %797 = vmatprep.subr.mxu0 0.0
    %798 = vmatpush2.msra.mxu0 0.0
    %799 = vmatprep.subr.mxu0 0.0
    %800 = vmatpush2.msra.mxu0 0.0
    %801 = vmatprep.subr.mxu0 0.0
    %802 = vmatpush2.msra.mxu0 0.0
    %803 = vmatprep.subr.mxu0 0.0
    %804 = vmatpush2.msra.mxu0 0.0
    %805 = vmatprep.subr.mxu0 0.0
    %806 = vmatpush2.msra.mxu0 0.0
    %807 = vmatprep.subr.mxu0 0.0
    %808 = vmatpush2.msra.mxu0 0.0
    %809 = vmatprep.subr.mxu0 0.0
    %810 = vmatpush2.msra.mxu0 0.0
    %811 = vmatprep.subr.mxu0 0.0
    %812 = vmatpush2.msra.mxu0 0.0
    %813 = vmatprep.subr.mxu0 0.0
    %814 = vmatpush2.msra.mxu0 0.0
    %815 = vmatprep.subr.mxu0 0.0
    %816 = vmatpush2.msra.mxu0 0.0
    %817 = vmatprep.subr.mxu0 0.0
    %818 = vmatpush2.msra.mxu0 0.0
    %819 = vmatprep.subr.mxu0 0.0
    %820 = vmatpush2.msra.mxu0 0.0
    %821 = vmatprep.subr.mxu0 0.0
    %822 = vmatpush2.msra.mxu0 0.0
    %823 = vmatprep.subr.mxu0 0.0
    %824 = vmatpush2.msra.mxu0 0.0
    %825 = vmatprep.subr.mxu0 0.0
    %826 = vmatpush2.msra.mxu0 0.0
    %827 = vmatprep.mubr.f32.mxu0 0.0
    %828 = vmatmul.mubr.f32.gmra.mxu0 %v758
    %v829 = vpop.f32.mrf.mxu0
    %v830 = vadd.f32 0.0, %v829
    %v831 = vpop.f32.mrf.mxu0
    %v832 = vadd.f32 0.0, %v831
    %833 = vdwg.mxu0
    %834 = vmatprep.subr.mxu0 %v432
    %835 = vmatpush1.msra.mxu0 %v431
    %836 = vmatprep.subr.mxu0 %v428
    %837 = vmatpush1.msra.mxu0 %v427
    %838 = vmatprep.subr.mxu0 %v424
    %839 = vmatpush1.msra.mxu0 %v423
    %840 = vmatprep.subr.mxu0 %v420
    %841 = vmatpush1.msra.mxu0 %v419
    %842 = vmatprep.subr.mxu0 %v416
    %843 = vmatpush1.msra.mxu0 %v415
    %844 = vmatprep.subr.mxu0 %v412
    %845 = vmatpush1.msra.mxu0 %v411
    %846 = vmatprep.subr.mxu0 %v408
    %847 = vmatpush1.msra.mxu0 %v407
    %848 = vmatprep.subr.mxu0 %v404
    %849 = vmatpush1.msra.mxu0 %v403
    %850 = vmatprep.subr.mxu0 %v400
    %851 = vmatpush1.msra.mxu0 %v399
    %852 = vmatprep.subr.mxu0 %v396
    %853 = vmatpush1.msra.mxu0 %v395
    %854 = vmatprep.subr.mxu0 %v392
    %855 = vmatpush1.msra.mxu0 %v391
    %856 = vmatprep.subr.mxu0 %v388
    %857 = vmatpush1.msra.mxu0 %v387
    %858 = vmatprep.subr.mxu0 %v384
    %859 = vmatpush1.msra.mxu0 %v383
    %860 = vmatprep.subr.mxu0 %v380
    %861 = vmatpush1.msra.mxu0 %v379
    %862 = vmatprep.subr.mxu0 %v376
    %863 = vmatpush1.msra.mxu0 %v375
    %864 = vmatprep.subr.mxu0 %v372
    %865 = vmatpush1.msra.mxu0 %v371
    %866 = vmatprep.subr.mxu0 0.0
    %867 = vmatpush2.msra.mxu0 0.0
    %868 = vmatprep.subr.mxu0 0.0
    %869 = vmatpush2.msra.mxu0 0.0
    %870 = vmatprep.subr.mxu0 0.0
    %871 = vmatpush2.msra.mxu0 0.0
    %872 = vmatprep.subr.mxu0 0.0
    %873 = vmatpush2.msra.mxu0 0.0
    %874 = vmatprep.subr.mxu0 0.0
    %875 = vmatpush2.msra.mxu0 0.0
    %876 = vmatprep.subr.mxu0 0.0
    %877 = vmatpush2.msra.mxu0 0.0
    %878 = vmatprep.subr.mxu0 0.0
    %879 = vmatpush2.msra.mxu0 0.0
    %880 = vmatprep.subr.mxu0 0.0
    %881 = vmatpush2.msra.mxu0 0.0
    %882 = vmatprep.subr.mxu0 0.0
    %883 = vmatpush2.msra.mxu0 0.0
    %884 = vmatprep.subr.mxu0 0.0
    %885 = vmatpush2.msra.mxu0 0.0
    %886 = vmatprep.subr.mxu0 0.0
    %887 = vmatpush2.msra.mxu0 0.0
    %888 = vmatprep.subr.mxu0 0.0
    %889 = vmatpush2.msra.mxu0 0.0
    %890 = vmatprep.subr.mxu0 0.0
    %891 = vmatpush2.msra.mxu0 0.0
    %892 = vmatprep.subr.mxu0 0.0
    %893 = vmatpush2.msra.mxu0 0.0
    %894 = vmatprep.subr.mxu0 0.0
    %895 = vmatpush2.msra.mxu0 0.0
    %896 = vmatprep.subr.mxu0 0.0
    %897 = vmatpush2.msra.mxu0 0.0
    %898 = vmatprep.mubr.f32.mxu0 0.0
    %899 = vmatmul.mubr.f32.gmra.mxu0 %v758
    %v900 = vpop.f32.mrf.mxu0
    %v901 = vadd.f32 0.0, %v900
    %v902 = vpop.f32.mrf.mxu0
    %v903 = vadd.f32 0.0, %v902
    %904 = vdwg.mxu0
    %v905 = vadd.f32 %v759, %v830
    %v906 = vadd.f32 %v760, %v832
    %v907 = vadd.f32 %v761, %v901
    %v908 = vadd.f32 %v762, %v903
    %v909 = vtanh.pop %v905
    %v910 = vtanh.pop %v906
    %v911 = vtanh.pop %v907
    %v912 = vtanh.pop %v908
    %v913 = vmul.f32 %v909, 0.5
    %v914 = vadd.f32 %v913, 0.5
    %v915 = vmul.f32 %v910, 0.5
    %v916 = vadd.f32 %v915, 0.5
    %v917 = vmul.f32 %v911, 0.5
    %v918 = vadd.f32 %v917, 0.5
    %v919 = vmul.f32 %v916, %v756
    %v920 = vmul.f32 %v914, %v912
    %v921 = vadd.f32 %v919, %v920
    %v922 = vtanh.pop %v921
    %v923 = vmul.f32 %v918, %v922
    %v924 = vld [vmem:[#allocation2 + $0x60] sm:$0xff]
    %v925 = vld [vmem:[#allocation2 + $0x68] sm:$0xff]
    %v926 = vld [vmem:[#allocation2 + $0x70] sm:$0xff]
    %v927 = vld [vmem:[#allocation2 + $0x78] sm:$0xff]
    %928 = vmatprep.subr.mxu0 %v430
    %929 = vmatpush1.msra.mxu0 %v429
    %930 = vmatprep.subr.mxu0 %v426
    %931 = vmatpush1.msra.mxu0 %v425
    %932 = vmatprep.subr.mxu0 %v422
    %933 = vmatpush1.msra.mxu0 %v421
    %934 = vmatprep.subr.mxu0 %v418
    %935 = vmatpush1.msra.mxu0 %v417
    %936 = vmatprep.subr.mxu0 %v414
    %937 = vmatpush1.msra.mxu0 %v413
    %938 = vmatprep.subr.mxu0 %v410
    %939 = vmatpush1.msra.mxu0 %v409
    %940 = vmatprep.subr.mxu0 %v406
    %941 = vmatpush1.msra.mxu0 %v405
    %942 = vmatprep.subr.mxu0 %v402
    %943 = vmatpush1.msra.mxu0 %v401
    %944 = vmatprep.subr.mxu0 %v398
    %945 = vmatpush1.msra.mxu0 %v397
    %946 = vmatprep.subr.mxu0 %v394
    %947 = vmatpush1.msra.mxu0 %v393
    %948 = vmatprep.subr.mxu0 %v390
    %949 = vmatpush1.msra.mxu0 %v389
    %950 = vmatprep.subr.mxu0 %v386
    %951 = vmatpush1.msra.mxu0 %v385
    %952 = vmatprep.subr.mxu0 %v382
    %953 = vmatpush1.msra.mxu0 %v381
    %954 = vmatprep.subr.mxu0 %v378
    %955 = vmatpush1.msra.mxu0 %v377
    %956 = vmatprep.subr.mxu0 %v374
    %957 = vmatpush1.msra.mxu0 %v373
    %958 = vmatprep.subr.mxu0 %v370
    %959 = vmatpush1.msra.mxu0 %v369
    %960 = vmatprep.subr.mxu0 0.0
    %961 = vmatpush2.msra.mxu0 0.0
    %962 = vmatprep.subr.mxu0 0.0
    %963 = vmatpush2.msra.mxu0 0.0
    %964 = vmatprep.subr.mxu0 0.0
    %965 = vmatpush2.msra.mxu0 0.0
    %966 = vmatprep.subr.mxu0 0.0
    %967 = vmatpush2.msra.mxu0 0.0
    %968 = vmatprep.subr.mxu0 0.0
    %969 = vmatpush2.msra.mxu0 0.0
    %970 = vmatprep.subr.mxu0 0.0
    %971 = vmatpush2.msra.mxu0 0.0
    %972 = vmatprep.subr.mxu0 0.0
    %973 = vmatpush2.msra.mxu0 0.0
    %974 = vmatprep.subr.mxu0 0.0
    %975 = vmatpush2.msra.mxu0 0.0
    %976 = vmatprep.subr.mxu0 0.0
    %977 = vmatpush2.msra.mxu0 0.0
    %978 = vmatprep.subr.mxu0 0.0
    %979 = vmatpush2.msra.mxu0 0.0
    %980 = vmatprep.subr.mxu0 0.0
    %981 = vmatpush2.msra.mxu0 0.0
    %982 = vmatprep.subr.mxu0 0.0
    %983 = vmatpush2.msra.mxu0 0.0
    %984 = vmatprep.subr.mxu0 0.0
    %985 = vmatpush2.msra.mxu0 0.0
    %986 = vmatprep.subr.mxu0 0.0
    %987 = vmatpush2.msra.mxu0 0.0
    %988 = vmatprep.subr.mxu0 0.0
    %989 = vmatpush2.msra.mxu0 0.0
    %990 = vmatprep.subr.mxu0 0.0
    %991 = vmatpush2.msra.mxu0 0.0
    %992 = vmatprep.mubr.f32.mxu0 0.0
    %993 = vmatmul.mubr.f32.gmra.mxu0 %v923
    %v994 = vpop.f32.mrf.mxu0
    %v995 = vadd.f32 0.0, %v994
    %v996 = vpop.f32.mrf.mxu0
    %v997 = vadd.f32 0.0, %v996
    %998 = vdwg.mxu0
    %999 = vmatprep.subr.mxu0 %v432
    %1000 = vmatpush1.msra.mxu0 %v431
    %1001 = vmatprep.subr.mxu0 %v428
    %1002 = vmatpush1.msra.mxu0 %v427
    %1003 = vmatprep.subr.mxu0 %v424
    %1004 = vmatpush1.msra.mxu0 %v423
    %1005 = vmatprep.subr.mxu0 %v420
    %1006 = vmatpush1.msra.mxu0 %v419
    %1007 = vmatprep.subr.mxu0 %v416
    %1008 = vmatpush1.msra.mxu0 %v415
    %1009 = vmatprep.subr.mxu0 %v412
    %1010 = vmatpush1.msra.mxu0 %v411
    %1011 = vmatprep.subr.mxu0 %v408
    %1012 = vmatpush1.msra.mxu0 %v407
    %1013 = vmatprep.subr.mxu0 %v404
    %1014 = vmatpush1.msra.mxu0 %v403
    %1015 = vmatprep.subr.mxu0 %v400
    %1016 = vmatpush1.msra.mxu0 %v399
    %1017 = vmatprep.subr.mxu0 %v396
    %1018 = vmatpush1.msra.mxu0 %v395
    %1019 = vmatprep.subr.mxu0 %v392
    %1020 = vmatpush1.msra.mxu0 %v391
    %1021 = vmatprep.subr.mxu0 %v388
    %1022 = vmatpush1.msra.mxu0 %v387
    %1023 = vmatprep.subr.mxu0 %v384
    %1024 = vmatpush1.msra.mxu0 %v383
    %1025 = vmatprep.subr.mxu0 %v380
    %1026 = vmatpush1.msra.mxu0 %v379
    %1027 = vmatprep.subr.mxu0 %v376
    %1028 = vmatpush1.msra.mxu0 %v375
    %1029 = vmatprep.subr.mxu0 %v372
    %1030 = vmatpush1.msra.mxu0 %v371
    %1031 = vmatprep.subr.mxu0 0.0
    %1032 = vmatpush2.msra.mxu0 0.0
    %1033 = vmatprep.subr.mxu0 0.0
    %1034 = vmatpush2.msra.mxu0 0.0
    %1035 = vmatprep.subr.mxu0 0.0
    %1036 = vmatpush2.msra.mxu0 0.0
    %1037 = vmatprep.subr.mxu0 0.0
    %1038 = vmatpush2.msra.mxu0 0.0
    %1039 = vmatprep.subr.mxu0 0.0
    %1040 = vmatpush2.msra.mxu0 0.0
    %1041 = vmatprep.subr.mxu0 0.0
    %1042 = vmatpush2.msra.mxu0 0.0
    %1043 = vmatprep.subr.mxu0 0.0
    %1044 = vmatpush2.msra.mxu0 0.0
    %1045 = vmatprep.subr.mxu0 0.0
    %1046 = vmatpush2.msra.mxu0 0.0
    %1047 = vmatprep.subr.mxu0 0.0
    %1048 = vmatpush2.msra.mxu0 0.0
    %1049 = vmatprep.subr.mxu0 0.0
    %1050 = vmatpush2.msra.mxu0 0.0
    %1051 = vmatprep.subr.mxu0 0.0
    %1052 = vmatpush2.msra.mxu0 0.0
    %1053 = vmatprep.subr.mxu0 0.0
    %1054 = vmatpush2.msra.mxu0 0.0
    %1055 = vmatprep.subr.mxu0 0.0
    %1056 = vmatpush2.msra.mxu0 0.0
    %1057 = vmatprep.subr.mxu0 0.0
    %1058 = vmatpush2.msra.mxu0 0.0
    %1059 = vmatprep.subr.mxu0 0.0
    %1060 = vmatpush2.msra.mxu0 0.0
    %1061 = vmatprep.subr.mxu0 0.0
    %1062 = vmatpush2.msra.mxu0 0.0
    %1063 = vmatprep.mubr.f32.mxu0 0.0
    %1064 = vmatmul.mubr.f32.gmra.mxu0 %v923
    %v1065 = vpop.f32.mrf.mxu0
    %v1066 = vadd.f32 0.0, %v1065
    %v1067 = vpop.f32.mrf.mxu0
    %v1068 = vadd.f32 0.0, %v1067
    %1069 = vdwg.mxu0
    %v1070 = vadd.f32 %v924, %v995
    %v1071 = vadd.f32 %v925, %v997
    %v1072 = vadd.f32 %v926, %v1066
    %v1073 = vadd.f32 %v927, %v1068
    %v1074 = vtanh.pop %v1070
    %v1075 = vtanh.pop %v1071
    %v1076 = vtanh.pop %v1072
    %v1077 = vtanh.pop %v1073
    %v1078 = vmul.f32 %v1074, 0.5
    %v1079 = vadd.f32 %v1078, 0.5
    %v1080 = vmul.f32 %v1075, 0.5
    %v1081 = vadd.f32 %v1080, 0.5
    %v1082 = vmul.f32 %v1076, 0.5
    %v1083 = vadd.f32 %v1082, 0.5
    %v1084 = vmul.f32 %v1081, %v921
    %v1085 = vmul.f32 %v1079, %v1077
    %v1086 = vadd.f32 %v1084, %v1085
    %v1087 = vtanh.pop %v1086
    %v1088 = vmul.f32 %v1083, %v1087
    %v1089 = vld [vmem:[#allocation2 + $0x80] sm:$0xff]
    %v1090 = vld [vmem:[#allocation2 + $0x88] sm:$0xff]
    %v1091 = vld [vmem:[#allocation2 + $0x90] sm:$0xff]
    %v1092 = vld [vmem:[#allocation2 + $0x98] sm:$0xff]
    %1093 = vmatprep.subr.mxu0 %v430
    %1094 = vmatpush1.msra.mxu0 %v429
    %1095 = vmatprep.subr.mxu0 %v426
    %1096 = vmatpush1.msra.mxu0 %v425
    %1097 = vmatprep.subr.mxu0 %v422
    %1098 = vmatpush1.msra.mxu0 %v421
    %1099 = vmatprep.subr.mxu0 %v418
    %1100 = vmatpush1.msra.mxu0 %v417
    %1101 = vmatprep.subr.mxu0 %v414
    %1102 = vmatpush1.msra.mxu0 %v413
    %1103 = vmatprep.subr.mxu0 %v410
    %1104 = vmatpush1.msra.mxu0 %v409
    %1105 = vmatprep.subr.mxu0 %v406
    %1106 = vmatpush1.msra.mxu0 %v405
    %1107 = vmatprep.subr.mxu0 %v402
    %1108 = vmatpush1.msra.mxu0 %v401
    %1109 = vmatprep.subr.mxu0 %v398
    %1110 = vmatpush1.msra.mxu0 %v397
    %1111 = vmatprep.subr.mxu0 %v394
    %1112 = vmatpush1.msra.mxu0 %v393
    %1113 = vmatprep.subr.mxu0 %v390
    %1114 = vmatpush1.msra.mxu0 %v389
    %1115 = vmatprep.subr.mxu0 %v386
    %1116 = vmatpush1.msra.mxu0 %v385
    %1117 = vmatprep.subr.mxu0 %v382
    %1118 = vmatpush1.msra.mxu0 %v381
    %1119 = vmatprep.subr.mxu0 %v378
    %1120 = vmatpush1.msra.mxu0 %v377
    %1121 = vmatprep.subr.mxu0 %v374
    %1122 = vmatpush1.msra.mxu0 %v373
    %1123 = vmatprep.subr.mxu0 %v370
    %1124 = vmatpush1.msra.mxu0 %v369
    %1125 = vmatprep.subr.mxu0 0.0
    %1126 = vmatpush2.msra.mxu0 0.0
    %1127 = vmatprep.subr.mxu0 0.0
    %1128 = vmatpush2.msra.mxu0 0.0
    %1129 = vmatprep.subr.mxu0 0.0
    %1130 = vmatpush2.msra.mxu0 0.0
    %1131 = vmatprep.subr.mxu0 0.0
    %1132 = vmatpush2.msra.mxu0 0.0
    %1133 = vmatprep.subr.mxu0 0.0
    %1134 = vmatpush2.msra.mxu0 0.0
    %1135 = vmatprep.subr.mxu0 0.0
    %1136 = vmatpush2.msra.mxu0 0.0
    %1137 = vmatprep.subr.mxu0 0.0
    %1138 = vmatpush2.msra.mxu0 0.0
    %1139 = vmatprep.subr.mxu0 0.0
    %1140 = vmatpush2.msra.mxu0 0.0
    %1141 = vmatprep.subr.mxu0 0.0
    %1142 = vmatpush2.msra.mxu0 0.0
    %1143 = vmatprep.subr.mxu0 0.0
    %1144 = vmatpush2.msra.mxu0 0.0
    %1145 = vmatprep.subr.mxu0 0.0
    %1146 = vmatpush2.msra.mxu0 0.0
    %1147 = vmatprep.subr.mxu0 0.0
    %1148 = vmatpush2.msra.mxu0 0.0
    %1149 = vmatprep.subr.mxu0 0.0
    %1150 = vmatpush2.msra.mxu0 0.0
    %1151 = vmatprep.subr.mxu0 0.0
    %1152 = vmatpush2.msra.mxu0 0.0
    %1153 = vmatprep.subr.mxu0 0.0
    %1154 = vmatpush2.msra.mxu0 0.0
    %1155 = vmatprep.subr.mxu0 0.0
    %1156 = vmatpush2.msra.mxu0 0.0
    %1157 = vmatprep.mubr.f32.mxu0 0.0
    %1158 = vmatmul.mubr.f32.gmra.mxu0 %v1088
    %v1159 = vpop.f32.mrf.mxu0
    %v1160 = vadd.f32 0.0, %v1159
    %v1161 = vpop.f32.mrf.mxu0
    %v1162 = vadd.f32 0.0, %v1161
    %1163 = vdwg.mxu0
    %1164 = vmatprep.subr.mxu0 %v432
    %1165 = vmatpush1.msra.mxu0 %v431
    %1166 = vmatprep.subr.mxu0 %v428
    %1167 = vmatpush1.msra.mxu0 %v427
    %1168 = vmatprep.subr.mxu0 %v424
    %1169 = vmatpush1.msra.mxu0 %v423
    %1170 = vmatprep.subr.mxu0 %v420
    %1171 = vmatpush1.msra.mxu0 %v419
    %1172 = vmatprep.subr.mxu0 %v416
    %1173 = vmatpush1.msra.mxu0 %v415
    %1174 = vmatprep.subr.mxu0 %v412
    %1175 = vmatpush1.msra.mxu0 %v411
    %1176 = vmatprep.subr.mxu0 %v408
    %1177 = vmatpush1.msra.mxu0 %v407
    %1178 = vmatprep.subr.mxu0 %v404
    %1179 = vmatpush1.msra.mxu0 %v403
    %1180 = vmatprep.subr.mxu0 %v400
    %1181 = vmatpush1.msra.mxu0 %v399
    %1182 = vmatprep.subr.mxu0 %v396
    %1183 = vmatpush1.msra.mxu0 %v395
    %1184 = vmatprep.subr.mxu0 %v392
    %1185 = vmatpush1.msra.mxu0 %v391
    %1186 = vmatprep.subr.mxu0 %v388
    %1187 = vmatpush1.msra.mxu0 %v387
    %1188 = vmatprep.subr.mxu0 %v384
    %1189 = vmatpush1.msra.mxu0 %v383
    %1190 = vmatprep.subr.mxu0 %v380
    %1191 = vmatpush1.msra.mxu0 %v379
    %1192 = vmatprep.subr.mxu0 %v376
    %1193 = vmatpush1.msra.mxu0 %v375
    %1194 = vmatprep.subr.mxu0 %v372
    %1195 = vmatpush1.msra.mxu0 %v371
    %1196 = vmatprep.subr.mxu0 0.0
    %1197 = vmatpush2.msra.mxu0 0.0
    %1198 = vmatprep.subr.mxu0 0.0
    %1199 = vmatpush2.msra.mxu0 0.0
    %1200 = vmatprep.subr.mxu0 0.0
    %1201 = vmatpush2.msra.mxu0 0.0
    %1202 = vmatprep.subr.mxu0 0.0
    %1203 = vmatpush2.msra.mxu0 0.0
    %1204 = vmatprep.subr.mxu0 0.0
    %1205 = vmatpush2.msra.mxu0 0.0
    %1206 = vmatprep.subr.mxu0 0.0
    %1207 = vmatpush2.msra.mxu0 0.0
    %1208 = vmatprep.subr.mxu0 0.0
    %1209 = vmatpush2.msra.mxu0 0.0
    %1210 = vmatprep.subr.mxu0 0.0
    %1211 = vmatpush2.msra.mxu0 0.0
    %1212 = vmatprep.subr.mxu0 0.0
    %1213 = vmatpush2.msra.mxu0 0.0
    %1214 = vmatprep.subr.mxu0 0.0
    %1215 = vmatpush2.msra.mxu0 0.0
    %1216 = vmatprep.subr.mxu0 0.0
    %1217 = vmatpush2.msra.mxu0 0.0
    %1218 = vmatprep.subr.mxu0 0.0
    %1219 = vmatpush2.msra.mxu0 0.0
    %1220 = vmatprep.subr.mxu0 0.0
    %1221 = vmatpush2.msra.mxu0 0.0
    %1222 = vmatprep.subr.mxu0 0.0
    %1223 = vmatpush2.msra.mxu0 0.0
    %1224 = vmatprep.subr.mxu0 0.0
    %1225 = vmatpush2.msra.mxu0 0.0
    %1226 = vmatprep.subr.mxu0 0.0
    %1227 = vmatpush2.msra.mxu0 0.0
    %1228 = vmatprep.mubr.f32.mxu0 0.0
    %1229 = vmatmul.mubr.f32.gmra.mxu0 %v1088
    %v1230 = vpop.f32.mrf.mxu0
    %v1231 = vadd.f32 0.0, %v1230
    %v1232 = vpop.f32.mrf.mxu0
    %v1233 = vadd.f32 0.0, %v1232
    %1234 = vdwg.mxu0
    %v1235 = vadd.f32 %v1089, %v1160
    %v1236 = vadd.f32 %v1090, %v1162
    %v1237 = vadd.f32 %v1091, %v1231
    %v1238 = vadd.f32 %v1092, %v1233
    %v1239 = vtanh.pop %v1235
    %v1240 = vtanh.pop %v1236
    %v1241 = vtanh.pop %v1237
    %v1242 = vtanh.pop %v1238
    %v1243 = vmul.f32 %v1239, 0.5
    %v1244 = vadd.f32 %v1243, 0.5
    %v1245 = vmul.f32 %v1240, 0.5
    %v1246 = vadd.f32 %v1245, 0.5
    %v1247 = vmul.f32 %v1241, 0.5
    %v1248 = vadd.f32 %v1247, 0.5
    %v1249 = vmul.f32 %v1246, %v1086
    %v1250 = vmul.f32 %v1244, %v1242
    %v1251 = vadd.f32 %v1249, %v1250
    %v1252 = vtanh.pop %v1251
    %v1253 = vmul.f32 %v1248, %v1252
    %v1254 = vld [vmem:[#allocation2 + $0xa0] sm:$0xff]
    %v1255 = vld [vmem:[#allocation2 + $0xa8] sm:$0xff]
    %v1256 = vld [vmem:[#allocation2 + $0xb0] sm:$0xff]
    %v1257 = vld [vmem:[#allocation2 + $0xb8] sm:$0xff]
    %1258 = vmatprep.subr.mxu0 %v430
    %1259 = vmatpush1.msra.mxu0 %v429
    %1260 = vmatprep.subr.mxu0 %v426
    %1261 = vmatpush1.msra.mxu0 %v425
    %1262 = vmatprep.subr.mxu0 %v422
    %1263 = vmatpush1.msra.mxu0 %v421
    %1264 = vmatprep.subr.mxu0 %v418
    %1265 = vmatpush1.msra.mxu0 %v417
    %1266 = vmatprep.subr.mxu0 %v414
    %1267 = vmatpush1.msra.mxu0 %v413
    %1268 = vmatprep.subr.mxu0 %v410
    %1269 = vmatpush1.msra.mxu0 %v409
    %1270 = vmatprep.subr.mxu0 %v406
    %1271 = vmatpush1.msra.mxu0 %v405
    %1272 = vmatprep.subr.mxu0 %v402
    %1273 = vmatpush1.msra.mxu0 %v401
    %1274 = vmatprep.subr.mxu0 %v398
    %1275 = vmatpush1.msra.mxu0 %v397
    %1276 = vmatprep.subr.mxu0 %v394
    %1277 = vmatpush1.msra.mxu0 %v393
    %1278 = vmatprep.subr.mxu0 %v390
    %1279 = vmatpush1.msra.mxu0 %v389
    %1280 = vmatprep.subr.mxu0 %v386
    %1281 = vmatpush1.msra.mxu0 %v385
    %1282 = vmatprep.subr.mxu0 %v382
    %1283 = vmatpush1.msra.mxu0 %v381
    %1284 = vmatprep.subr.mxu0 %v378
    %1285 = vmatpush1.msra.mxu0 %v377
    %1286 = vmatprep.subr.mxu0 %v374
    %1287 = vmatpush1.msra.mxu0 %v373
    %1288 = vmatprep.subr.mxu0 %v370
    %1289 = vmatpush1.msra.mxu0 %v369
    %1290 = vmatprep.subr.mxu0 0.0
    %1291 = vmatpush2.msra.mxu0 0.0
    %1292 = vmatprep.subr.mxu0 0.0
    %1293 = vmatpush2.msra.mxu0 0.0
    %1294 = vmatprep.subr.mxu0 0.0
    %1295 = vmatpush2.msra.mxu0 0.0
    %1296 = vmatprep.subr.mxu0 0.0
    %1297 = vmatpush2.msra.mxu0 0.0
    %1298 = vmatprep.subr.mxu0 0.0
    %1299 = vmatpush2.msra.mxu0 0.0
    %1300 = vmatprep.subr.mxu0 0.0
    %1301 = vmatpush2.msra.mxu0 0.0
    %1302 = vmatprep.subr.mxu0 0.0
    %1303 = vmatpush2.msra.mxu0 0.0
    %1304 = vmatprep.subr.mxu0 0.0
    %1305 = vmatpush2.msra.mxu0 0.0
    %1306 = vmatprep.subr.mxu0 0.0
    %1307 = vmatpush2.msra.mxu0 0.0
    %1308 = vmatprep.subr.mxu0 0.0
    %1309 = vmatpush2.msra.mxu0 0.0
    %1310 = vmatprep.subr.mxu0 0.0
    %1311 = vmatpush2.msra.mxu0 0.0
    %1312 = vmatprep.subr.mxu0 0.0
    %1313 = vmatpush2.msra.mxu0 0.0
    %1314 = vmatprep.subr.mxu0 0.0
    %1315 = vmatpush2.msra.mxu0 0.0
    %1316 = vmatprep.subr.mxu0 0.0
    %1317 = vmatpush2.msra.mxu0 0.0
    %1318 = vmatprep.subr.mxu0 0.0
    %1319 = vmatpush2.msra.mxu0 0.0
    %1320 = vmatprep.subr.mxu0 0.0
    %1321 = vmatpush2.msra.mxu0 0.0
    %1322 = vmatprep.mubr.f32.mxu0 0.0
    %1323 = vmatmul.mubr.f32.gmra.mxu0 %v1253
    %v1324 = vpop.f32.mrf.mxu0
    %v1325 = vadd.f32 0.0, %v1324
    %v1326 = vpop.f32.mrf.mxu0
    %v1327 = vadd.f32 0.0, %v1326
    %1328 = vdwg.mxu0
    %1329 = vmatprep.subr.mxu0 %v432
    %1330 = vmatpush1.msra.mxu0 %v431
    %1331 = vmatprep.subr.mxu0 %v428
    %1332 = vmatpush1.msra.mxu0 %v427
    %1333 = vmatprep.subr.mxu0 %v424
    %1334 = vmatpush1.msra.mxu0 %v423
    %1335 = vmatprep.subr.mxu0 %v420
    %1336 = vmatpush1.msra.mxu0 %v419
    %1337 = vmatprep.subr.mxu0 %v416
    %1338 = vmatpush1.msra.mxu0 %v415
    %1339 = vmatprep.subr.mxu0 %v412
    %1340 = vmatpush1.msra.mxu0 %v411
    %1341 = vmatprep.subr.mxu0 %v408
    %1342 = vmatpush1.msra.mxu0 %v407
    %1343 = vmatprep.subr.mxu0 %v404
    %1344 = vmatpush1.msra.mxu0 %v403
    %1345 = vmatprep.subr.mxu0 %v400
    %1346 = vmatpush1.msra.mxu0 %v399
    %1347 = vmatprep.subr.mxu0 %v396
    %1348 = vmatpush1.msra.mxu0 %v395
    %1349 = vmatprep.subr.mxu0 %v392
    %1350 = vmatpush1.msra.mxu0 %v391
    %1351 = vmatprep.subr.mxu0 %v388
    %1352 = vmatpush1.msra.mxu0 %v387
    %1353 = vmatprep.subr.mxu0 %v384
    %1354 = vmatpush1.msra.mxu0 %v383
    %1355 = vmatprep.subr.mxu0 %v380
    %1356 = vmatpush1.msra.mxu0 %v379
    %1357 = vmatprep.subr.mxu0 %v376
    %1358 = vmatpush1.msra.mxu0 %v375
    %1359 = vmatprep.subr.mxu0 %v372
    %1360 = vmatpush1.msra.mxu0 %v371
    %1361 = vmatprep.subr.mxu0 0.0
    %1362 = vmatpush2.msra.mxu0 0.0
    %1363 = vmatprep.subr.mxu0 0.0
    %1364 = vmatpush2.msra.mxu0 0.0
    %1365 = vmatprep.subr.mxu0 0.0
    %1366 = vmatpush2.msra.mxu0 0.0
    %1367 = vmatprep.subr.mxu0 0.0
    %1368 = vmatpush2.msra.mxu0 0.0
    %1369 = vmatprep.subr.mxu0 0.0
    %1370 = vmatpush2.msra.mxu0 0.0
    %1371 = vmatprep.subr.mxu0 0.0
    %1372 = vmatpush2.msra.mxu0 0.0
    %1373 = vmatprep.subr.mxu0 0.0
    %1374 = vmatpush2.msra.mxu0 0.0
    %1375 = vmatprep.subr.mxu0 0.0
    %1376 = vmatpush2.msra.mxu0 0.0
    %1377 = vmatprep.subr.mxu0 0.0
    %1378 = vmatpush2.msra.mxu0 0.0
    %1379 = vmatprep.subr.mxu0 0.0
    %1380 = vmatpush2.msra.mxu0 0.0
    %1381 = vmatprep.subr.mxu0 0.0
    %1382 = vmatpush2.msra.mxu0 0.0
    %1383 = vmatprep.subr.mxu0 0.0
    %1384 = vmatpush2.msra.mxu0 0.0
    %1385 = vmatprep.subr.mxu0 0.0
    %1386 = vmatpush2.msra.mxu0 0.0
    %1387 = vmatprep.subr.mxu0 0.0
    %1388 = vmatpush2.msra.mxu0 0.0
    %1389 = vmatprep.subr.mxu0 0.0
    %1390 = vmatpush2.msra.mxu0 0.0
    %1391 = vmatprep.subr.mxu0 0.0
    %1392 = vmatpush2.msra.mxu0 0.0
    %1393 = vmatprep.mubr.f32.mxu0 0.0
    %1394 = vmatmul.mubr.f32.gmra.mxu0 %v1253
    %v1395 = vpop.f32.mrf.mxu0
    %v1396 = vadd.f32 0.0, %v1395
    %v1397 = vpop.f32.mrf.mxu0
    %v1398 = vadd.f32 0.0, %v1397
    %1399 = vdwg.mxu0
    %v1400 = vadd.f32 %v1254, %v1325
    %v1401 = vadd.f32 %v1255, %v1327
    %v1402 = vadd.f32 %v1256, %v1396
    %v1403 = vadd.f32 %v1257, %v1398
    %v1404 = vtanh.pop %v1400
    %v1405 = vtanh.pop %v1401
    %v1406 = vtanh.pop %v1402
    %v1407 = vtanh.pop %v1403
    %v1408 = vmul.f32 %v1404, 0.5
    %v1409 = vadd.f32 %v1408, 0.5
    %v1410 = vmul.f32 %v1405, 0.5
    %v1411 = vadd.f32 %v1410, 0.5
    %v1412 = vmul.f32 %v1406, 0.5
    %v1413 = vadd.f32 %v1412, 0.5
    %v1414 = vmul.f32 %v1411, %v1251
    %v1415 = vmul.f32 %v1409, %v1407
    %v1416 = vadd.f32 %v1414, %v1415
    %v1417 = vtanh.pop %v1416
    %v1418 = vmul.f32 %v1413, %v1417
    %v1419 = vld [vmem:[#allocation2 + $0xc0] sm:$0xff]
    %v1420 = vld [vmem:[#allocation2 + $0xc8] sm:$0xff]
    %v1421 = vld [vmem:[#allocation2 + $0xd0] sm:$0xff]
    %v1422 = vld [vmem:[#allocation2 + $0xd8] sm:$0xff]
    %1423 = vmatprep.subr.mxu0 %v430
    %1424 = vmatpush1.msra.mxu0 %v429
    %1425 = vmatprep.subr.mxu0 %v426
    %1426 = vmatpush1.msra.mxu0 %v425
    %1427 = vmatprep.subr.mxu0 %v422
    %1428 = vmatpush1.msra.mxu0 %v421
    %1429 = vmatprep.subr.mxu0 %v418
    %1430 = vmatpush1.msra.mxu0 %v417
    %1431 = vmatprep.subr.mxu0 %v414
    %1432 = vmatpush1.msra.mxu0 %v413
    %1433 = vmatprep.subr.mxu0 %v410
    %1434 = vmatpush1.msra.mxu0 %v409
    %1435 = vmatprep.subr.mxu0 %v406
    %1436 = vmatpush1.msra.mxu0 %v405
    %1437 = vmatprep.subr.mxu0 %v402
    %1438 = vmatpush1.msra.mxu0 %v401
    %1439 = vmatprep.subr.mxu0 %v398
    %1440 = vmatpush1.msra.mxu0 %v397
    %1441 = vmatprep.subr.mxu0 %v394
    %1442 = vmatpush1.msra.mxu0 %v393
    %1443 = vmatprep.subr.mxu0 %v390
    %1444 = vmatpush1.msra.mxu0 %v389
    %1445 = vmatprep.subr.mxu0 %v386
    %1446 = vmatpush1.msra.mxu0 %v385
    %1447 = vmatprep.subr.mxu0 %v382
    %1448 = vmatpush1.msra.mxu0 %v381
    %1449 = vmatprep.subr.mxu0 %v378
    %1450 = vmatpush1.msra.mxu0 %v377
    %1451 = vmatprep.subr.mxu0 %v374
    %1452 = vmatpush1.msra.mxu0 %v373
    %1453 = vmatprep.subr.mxu0 %v370
    %1454 = vmatpush1.msra.mxu0 %v369
    %1455 = vmatprep.subr.mxu0 0.0
    %1456 = vmatpush2.msra.mxu0 0.0
    %1457 = vmatprep.subr.mxu0 0.0
    %1458 = vmatpush2.msra.mxu0 0.0
    %1459 = vmatprep.subr.mxu0 0.0
    %1460 = vmatpush2.msra.mxu0 0.0
    %1461 = vmatprep.subr.mxu0 0.0
    %1462 = vmatpush2.msra.mxu0 0.0
    %1463 = vmatprep.subr.mxu0 0.0
    %1464 = vmatpush2.msra.mxu0 0.0
    %1465 = vmatprep.subr.mxu0 0.0
    %1466 = vmatpush2.msra.mxu0 0.0
    %1467 = vmatprep.subr.mxu0 0.0
    %1468 = vmatpush2.msra.mxu0 0.0
    %1469 = vmatprep.subr.mxu0 0.0
    %1470 = vmatpush2.msra.mxu0 0.0
    %1471 = vmatprep.subr.mxu0 0.0
    %1472 = vmatpush2.msra.mxu0 0.0
    %1473 = vmatprep.subr.mxu0 0.0
    %1474 = vmatpush2.msra.mxu0 0.0
    %1475 = vmatprep.subr.mxu0 0.0
    %1476 = vmatpush2.msra.mxu0 0.0
    %1477 = vmatprep.subr.mxu0 0.0
    %1478 = vmatpush2.msra.mxu0 0.0
    %1479 = vmatprep.subr.mxu0 0.0
    %1480 = vmatpush2.msra.mxu0 0.0
    %1481 = vmatprep.subr.mxu0 0.0
    %1482 = vmatpush2.msra.mxu0 0.0
    %1483 = vmatprep.subr.mxu0 0.0
    %1484 = vmatpush2.msra.mxu0 0.0
    %1485 = vmatprep.subr.mxu0 0.0
    %1486 = vmatpush2.msra.mxu0 0.0
    %1487 = vmatprep.mubr.f32.mxu0 0.0
    %1488 = vmatmul.mubr.f32.gmra.mxu0 %v1418
    %v1489 = vpop.f32.mrf.mxu0
    %v1490 = vadd.f32 0.0, %v1489
    %v1491 = vpop.f32.mrf.mxu0
    %v1492 = vadd.f32 0.0, %v1491
    %1493 = vdwg.mxu0
    %1494 = vmatprep.subr.mxu0 %v432
    %1495 = vmatpush1.msra.mxu0 %v431
    %1496 = vmatprep.subr.mxu0 %v428
    %1497 = vmatpush1.msra.mxu0 %v427
    %1498 = vmatprep.subr.mxu0 %v424
    %1499 = vmatpush1.msra.mxu0 %v423
    %1500 = vmatprep.subr.mxu0 %v420
    %1501 = vmatpush1.msra.mxu0 %v419
    %1502 = vmatprep.subr.mxu0 %v416
    %1503 = vmatpush1.msra.mxu0 %v415
    %1504 = vmatprep.subr.mxu0 %v412
    %1505 = vmatpush1.msra.mxu0 %v411
    %1506 = vmatprep.subr.mxu0 %v408
    %1507 = vmatpush1.msra.mxu0 %v407
    %1508 = vmatprep.subr.mxu0 %v404
    %1509 = vmatpush1.msra.mxu0 %v403
    %1510 = vmatprep.subr.mxu0 %v400
    %1511 = vmatpush1.msra.mxu0 %v399
    %1512 = vmatprep.subr.mxu0 %v396
    %1513 = vmatpush1.msra.mxu0 %v395
    %1514 = vmatprep.subr.mxu0 %v392
    %1515 = vmatpush1.msra.mxu0 %v391
    %1516 = vmatprep.subr.mxu0 %v388
    %1517 = vmatpush1.msra.mxu0 %v387
    %1518 = vmatprep.subr.mxu0 %v384
    %1519 = vmatpush1.msra.mxu0 %v383
    %1520 = vmatprep.subr.mxu0 %v380
    %1521 = vmatpush1.msra.mxu0 %v379
    %1522 = vmatprep.subr.mxu0 %v376
    %1523 = vmatpush1.msra.mxu0 %v375
    %1524 = vmatprep.subr.mxu0 %v372
    %1525 = vmatpush1.msra.mxu0 %v371
    %1526 = vmatprep.subr.mxu0 0.0
    %1527 = vmatpush2.msra.mxu0 0.0
    %1528 = vmatprep.subr.mxu0 0.0
    %1529 = vmatpush2.msra.mxu0 0.0
    %1530 = vmatprep.subr.mxu0 0.0
    %1531 = vmatpush2.msra.mxu0 0.0
    %1532 = vmatprep.subr.mxu0 0.0
    %1533 = vmatpush2.msra.mxu0 0.0
    %1534 = vmatprep.subr.mxu0 0.0
    %1535 = vmatpush2.msra.mxu0 0.0
    %1536 = vmatprep.subr.mxu0 0.0
    %1537 = vmatpush2.msra.mxu0 0.0
    %1538 = vmatprep.subr.mxu0 0.0
    %1539 = vmatpush2.msra.mxu0 0.0
    %1540 = vmatprep.subr.mxu0 0.0
    %1541 = vmatpush2.msra.mxu0 0.0
    %1542 = vmatprep.subr.mxu0 0.0
    %1543 = vmatpush2.msra.mxu0 0.0
    %1544 = vmatprep.subr.mxu0 0.0
    %1545 = vmatpush2.msra.mxu0 0.0
    %1546 = vmatprep.subr.mxu0 0.0
    %1547 = vmatpush2.msra.mxu0 0.0
    %1548 = vmatprep.subr.mxu0 0.0
    %1549 = vmatpush2.msra.mxu0 0.0
    %1550 = vmatprep.subr.mxu0 0.0
    %1551 = vmatpush2.msra.mxu0 0.0
    %1552 = vmatprep.subr.mxu0 0.0
    %1553 = vmatpush2.msra.mxu0 0.0
    %1554 = vmatprep.subr.mxu0 0.0
    %1555 = vmatpush2.msra.mxu0 0.0
    %1556 = vmatprep.subr.mxu0 0.0
    %1557 = vmatpush2.msra.mxu0 0.0
    %1558 = vmatprep.mubr.f32.mxu0 0.0
    %1559 = vmatmul.mubr.f32.gmra.mxu0 %v1418
    %v1560 = vpop.f32.mrf.mxu0
    %v1561 = vadd.f32 0.0, %v1560
    %v1562 = vpop.f32.mrf.mxu0
    %v1563 = vadd.f32 0.0, %v1562
    %1564 = vdwg.mxu0
    %v1565 = vadd.f32 %v1419, %v1490
    %v1566 = vadd.f32 %v1420, %v1492
    %v1567 = vadd.f32 %v1421, %v1561
    %v1568 = vadd.f32 %v1422, %v1563
    %v1569 = vtanh.pop %v1565
    %v1570 = vtanh.pop %v1566
    %v1571 = vtanh.pop %v1567
    %v1572 = vtanh.pop %v1568
    %v1573 = vmul.f32 %v1569, 0.5
    %v1574 = vadd.f32 %v1573, 0.5
    %v1575 = vmul.f32 %v1570, 0.5
    %v1576 = vadd.f32 %v1575, 0.5
    %v1577 = vmul.f32 %v1571, 0.5
    %v1578 = vadd.f32 %v1577, 0.5
    %v1579 = vmul.f32 %v1576, %v1416
    %v1580 = vmul.f32 %v1574, %v1572
    %v1581 = vadd.f32 %v1579, %v1580
    %v1582 = vtanh.pop %v1581
    %v1583 = vmul.f32 %v1578, %v1582
    %v1584 = vld [vmem:[#allocation2 + $0xe0] sm:$0xff]
    %v1585 = vld [vmem:[#allocation2 + $0xe8] sm:$0xff]
    %v1586 = vld [vmem:[#allocation2 + $0xf0] sm:$0xff]
    %v1587 = vld [vmem:[#allocation2 + $0xf8] sm:$0xff]
    %1588 = vmatprep.subr.mxu0 %v430
    %1589 = vmatpush1.msra.mxu0 %v429
    %1590 = vmatprep.subr.mxu0 %v426
    %1591 = vmatpush1.msra.mxu0 %v425
    %1592 = vmatprep.subr.mxu0 %v422
    %1593 = vmatpush1.msra.mxu0 %v421
    %1594 = vmatprep.subr.mxu0 %v418
    %1595 = vmatpush1.msra.mxu0 %v417
    %1596 = vmatprep.subr.mxu0 %v414
    %1597 = vmatpush1.msra.mxu0 %v413
    %1598 = vmatprep.subr.mxu0 %v410
    %1599 = vmatpush1.msra.mxu0 %v409
    %1600 = vmatprep.subr.mxu0 %v406
    %1601 = vmatpush1.msra.mxu0 %v405
    %1602 = vmatprep.subr.mxu0 %v402
    %1603 = vmatpush1.msra.mxu0 %v401
    %1604 = vmatprep.subr.mxu0 %v398
    %1605 = vmatpush1.msra.mxu0 %v397
    %1606 = vmatprep.subr.mxu0 %v394
    %1607 = vmatpush1.msra.mxu0 %v393
    %1608 = vmatprep.subr.mxu0 %v390
    %1609 = vmatpush1.msra.mxu0 %v389
    %1610 = vmatprep.subr.mxu0 %v386
    %1611 = vmatpush1.msra.mxu0 %v385
    %1612 = vmatprep.subr.mxu0 %v382
    %1613 = vmatpush1.msra.mxu0 %v381
    %1614 = vmatprep.subr.mxu0 %v378
    %1615 = vmatpush1.msra.mxu0 %v377
    %1616 = vmatprep.subr.mxu0 %v374
    %1617 = vmatpush1.msra.mxu0 %v373
    %1618 = vmatprep.subr.mxu0 %v370
    %1619 = vmatpush1.msra.mxu0 %v369
    %1620 = vmatprep.subr.mxu0 0.0
    %1621 = vmatpush2.msra.mxu0 0.0
    %1622 = vmatprep.subr.mxu0 0.0
    %1623 = vmatpush2.msra.mxu0 0.0
    %1624 = vmatprep.subr.mxu0 0.0
    %1625 = vmatpush2.msra.mxu0 0.0
    %1626 = vmatprep.subr.mxu0 0.0
    %1627 = vmatpush2.msra.mxu0 0.0
    %1628 = vmatprep.subr.mxu0 0.0
    %1629 = vmatpush2.msra.mxu0 0.0
    %1630 = vmatprep.subr.mxu0 0.0
    %1631 = vmatpush2.msra.mxu0 0.0
    %1632 = vmatprep.subr.mxu0 0.0
    %1633 = vmatpush2.msra.mxu0 0.0
    %1634 = vmatprep.subr.mxu0 0.0
    %1635 = vmatpush2.msra.mxu0 0.0
    %1636 = vmatprep.subr.mxu0 0.0
    %1637 = vmatpush2.msra.mxu0 0.0
    %1638 = vmatprep.subr.mxu0 0.0
    %1639 = vmatpush2.msra.mxu0 0.0
    %1640 = vmatprep.subr.mxu0 0.0
    %1641 = vmatpush2.msra.mxu0 0.0
    %1642 = vmatprep.subr.mxu0 0.0
    %1643 = vmatpush2.msra.mxu0 0.0
    %1644 = vmatprep.subr.mxu0 0.0
    %1645 = vmatpush2.msra.mxu0 0.0
    %1646 = vmatprep.subr.mxu0 0.0
    %1647 = vmatpush2.msra.mxu0 0.0
    %1648 = vmatprep.subr.mxu0 0.0
    %1649 = vmatpush2.msra.mxu0 0.0
    %1650 = vmatprep.subr.mxu0 0.0
    %1651 = vmatpush2.msra.mxu0 0.0
    %1652 = vmatprep.mubr.f32.mxu0 0.0
    %1653 = vmatmul.mubr.f32.gmra.mxu0 %v1583
    %v1654 = vpop.f32.mrf.mxu0
    %v1655 = vadd.f32 0.0, %v1654
    %v1656 = vpop.f32.mrf.mxu0
    %v1657 = vadd.f32 0.0, %v1656
    %1658 = vdwg.mxu0
    %1659 = vmatprep.subr.mxu0 %v432
    %1660 = vmatpush1.msra.mxu0 %v431
    %1661 = vmatprep.subr.mxu0 %v428
    %1662 = vmatpush1.msra.mxu0 %v427
    %1663 = vmatprep.subr.mxu0 %v424
    %1664 = vmatpush1.msra.mxu0 %v423
    %1665 = vmatprep.subr.mxu0 %v420
    %1666 = vmatpush1.msra.mxu0 %v419
    %1667 = vmatprep.subr.mxu0 %v416
    %1668 = vmatpush1.msra.mxu0 %v415
    %1669 = vmatprep.subr.mxu0 %v412
    %1670 = vmatpush1.msra.mxu0 %v411
    %1671 = vmatprep.subr.mxu0 %v408
    %1672 = vmatpush1.msra.mxu0 %v407
    %1673 = vmatprep.subr.mxu0 %v404
    %1674 = vmatpush1.msra.mxu0 %v403
    %1675 = vmatprep.subr.mxu0 %v400
    %1676 = vmatpush1.msra.mxu0 %v399
    %1677 = vmatprep.subr.mxu0 %v396
    %1678 = vmatpush1.msra.mxu0 %v395
    %1679 = vmatprep.subr.mxu0 %v392
    %1680 = vmatpush1.msra.mxu0 %v391
    %1681 = vmatprep.subr.mxu0 %v388
    %1682 = vmatpush1.msra.mxu0 %v387
    %1683 = vmatprep.subr.mxu0 %v384
    %1684 = vmatpush1.msra.mxu0 %v383
    %1685 = vmatprep.subr.mxu0 %v380
    %1686 = vmatpush1.msra.mxu0 %v379
    %1687 = vmatprep.subr.mxu0 %v376
    %1688 = vmatpush1.msra.mxu0 %v375
    %1689 = vmatprep.subr.mxu0 %v372
    %1690 = vmatpush1.msra.mxu0 %v371
    %1691 = vmatprep.subr.mxu0 0.0
    %1692 = vmatpush2.msra.mxu0 0.0
    %1693 = vmatprep.subr.mxu0 0.0
    %1694 = vmatpush2.msra.mxu0 0.0
    %1695 = vmatprep.subr.mxu0 0.0
    %1696 = vmatpush2.msra.mxu0 0.0
    %1697 = vmatprep.subr.mxu0 0.0
    %1698 = vmatpush2.msra.mxu0 0.0
    %1699 = vmatprep.subr.mxu0 0.0
    %1700 = vmatpush2.msra.mxu0 0.0
    %1701 = vmatprep.subr.mxu0 0.0
    %1702 = vmatpush2.msra.mxu0 0.0
    %1703 = vmatprep.subr.mxu0 0.0
    %1704 = vmatpush2.msra.mxu0 0.0
    %1705 = vmatprep.subr.mxu0 0.0
    %1706 = vmatpush2.msra.mxu0 0.0
    %1707 = vmatprep.subr.mxu0 0.0
    %1708 = vmatpush2.msra.mxu0 0.0
    %1709 = vmatprep.subr.mxu0 0.0
    %1710 = vmatpush2.msra.mxu0 0.0
    %1711 = vmatprep.subr.mxu0 0.0
    %1712 = vmatpush2.msra.mxu0 0.0
    %1713 = vmatprep.subr.mxu0 0.0
    %1714 = vmatpush2.msra.mxu0 0.0
    %1715 = vmatprep.subr.mxu0 0.0
    %1716 = vmatpush2.msra.mxu0 0.0
    %1717 = vmatprep.subr.mxu0 0.0
    %1718 = vmatpush2.msra.mxu0 0.0
    %1719 = vmatprep.subr.mxu0 0.0
    %1720 = vmatpush2.msra.mxu0 0.0
    %1721 = vmatprep.subr.mxu0 0.0
    %1722 = vmatpush2.msra.mxu0 0.0
    %1723 = vmatprep.mubr.f32.mxu0 0.0
    %1724 = vmatmul.mubr.f32.gmra.mxu0 %v1583
    %v1725 = vpop.f32.mrf.mxu0
    %v1726 = vadd.f32 0.0, %v1725
    %v1727 = vpop.f32.mrf.mxu0
    %v1728 = vadd.f32 0.0, %v1727
    %1729 = vdwg.mxu0
    %v1730 = vadd.f32 %v1584, %v1655
    %v1731 = vadd.f32 %v1585, %v1657
    %v1732 = vadd.f32 %v1586, %v1726
    %v1733 = vadd.f32 %v1587, %v1728
    %v1734 = vtanh.pop %v1730
    %v1735 = vtanh.pop %v1731
    %v1736 = vtanh.pop %v1732
    %v1737 = vtanh.pop %v1733
    %v1738 = vmul.f32 %v1734, 0.5
    %v1739 = vadd.f32 %v1738, 0.5
    %v1740 = vmul.f32 %v1735, 0.5
    %v1741 = vadd.f32 %v1740, 0.5
    %v1742 = vmul.f32 %v1736, 0.5
    %v1743 = vadd.f32 %v1742, 0.5
    %v1744 = vmul.f32 %v1741, %v1581
    %v1745 = vmul.f32 %v1739, %v1737
    %v1746 = vadd.f32 %v1744, %v1745
    %v1747 = vtanh.pop %v1746
    %v1748 = vmul.f32 %v1743, %v1747
    %v1749 = vld [vmem:[%s4] sm:$0xff]
    %v1750 = vld [vmem:[%s4 + $0x8] sm:$0xff]
    %v1751 = vld [vmem:[%s4 + $0x10] sm:$0xff]
    %v1752 = vld [vmem:[%s4 + $0x18] sm:$0xff]
    %v1753 = vld [vmem:[%s4 + $0x20] sm:$0xff]
    %v1754 = vld [vmem:[%s4 + $0x28] sm:$0xff]
    %v1755 = vld [vmem:[%s4 + $0x30] sm:$0xff]
    %v1756 = vld [vmem:[%s4 + $0x38] sm:$0xff]
    %v1757 = vld [vmem:[%s4 + $0x40] sm:$0xff]
    %v1758 = vld [vmem:[%s4 + $0x48] sm:$0xff]
    %v1759 = vld [vmem:[%s4 + $0x50] sm:$0xff]
    %v1760 = vld [vmem:[%s4 + $0x58] sm:$0xff]
    %v1761 = vld [vmem:[%s4 + $0x60] sm:$0xff]
    %v1762 = vld [vmem:[%s4 + $0x68] sm:$0xff]
    %v1763 = vld [vmem:[%s4 + $0x70] sm:$0xff]
    %v1764 = vld [vmem:[%s4 + $0x78] sm:$0xff]
    %v1765 = vld [vmem:[%s5] sm:$0x1]
    %v1767 = vlaneseq
    %v1768 = vshrl.u32 %v1767, 7
    %v1769 = vsub.s32 0, %v1768
    %v1770 = vrot.slane %v1765, %v1769
    %1772 = vmatprep.subr.mxu0 0.0
    %1773 = vmatpush1.msra.mxu0 %v1764
    %1774 = vmatprep.subr.mxu0 0.0
    %1775 = vmatpush1.msra.mxu0 %v1763
    %1776 = vmatprep.subr.mxu0 0.0
    %1777 = vmatpush1.msra.mxu0 %v1762
    %1778 = vmatprep.subr.mxu0 0.0
    %1779 = vmatpush1.msra.mxu0 %v1761
    %1780 = vmatprep.subr.mxu0 0.0
    %1781 = vmatpush1.msra.mxu0 %v1760
    %1782 = vmatprep.subr.mxu0 0.0
    %1783 = vmatpush1.msra.mxu0 %v1759
    %1784 = vmatprep.subr.mxu0 0.0
    %1785 = vmatpush1.msra.mxu0 %v1758
    %1786 = vmatprep.subr.mxu0 0.0
    %1787 = vmatpush1.msra.mxu0 %v1757
    %1788 = vmatprep.subr.mxu0 0.0
    %1789 = vmatpush1.msra.mxu0 %v1756
    %1790 = vmatprep.subr.mxu0 0.0
    %1791 = vmatpush1.msra.mxu0 %v1755
    %1792 = vmatprep.subr.mxu0 0.0
    %1793 = vmatpush1.msra.mxu0 %v1754
    %1794 = vmatprep.subr.mxu0 0.0
    %1795 = vmatpush1.msra.mxu0 %v1753
    %1796 = vmatprep.subr.mxu0 0.0
    %1797 = vmatpush1.msra.mxu0 %v1752
    %1798 = vmatprep.subr.mxu0 0.0
    %1799 = vmatpush1.msra.mxu0 %v1751
    %1800 = vmatprep.subr.mxu0 0.0
    %1801 = vmatpush1.msra.mxu0 %v1750
    %1802 = vmatprep.subr.mxu0 0.0
    %1803 = vmatpush1.msra.mxu0 %v1749
    %1804 = vmatprep.subr.mxu0 0.0
    %1805 = vmatpush2.msra.mxu0 0.0
    %1806 = vmatprep.subr.mxu0 0.0
    %1807 = vmatpush2.msra.mxu0 0.0
    %1808 = vmatprep.subr.mxu0 0.0
    %1809 = vmatpush2.msra.mxu0 0.0
    %1810 = vmatprep.subr.mxu0 0.0
    %1811 = vmatpush2.msra.mxu0 0.0
    %1812 = vmatprep.subr.mxu0 0.0
    %1813 = vmatpush2.msra.mxu0 0.0
    %1814 = vmatprep.subr.mxu0 0.0
    %1815 = vmatpush2.msra.mxu0 0.0
    %1816 = vmatprep.subr.mxu0 0.0
    %1817 = vmatpush2.msra.mxu0 0.0
    %1818 = vmatprep.subr.mxu0 0.0
    %1819 = vmatpush2.msra.mxu0 0.0
    %1820 = vmatprep.subr.mxu0 0.0
    %1821 = vmatpush2.msra.mxu0 0.0
    %1822 = vmatprep.subr.mxu0 0.0
    %1823 = vmatpush2.msra.mxu0 0.0
    %1824 = vmatprep.subr.mxu0 0.0
    %1825 = vmatpush2.msra.mxu0 0.0
    %1826 = vmatprep.subr.mxu0 0.0
    %1827 = vmatpush2.msra.mxu0 0.0
    %1828 = vmatprep.subr.mxu0 0.0
    %1829 = vmatpush2.msra.mxu0 0.0
    %1830 = vmatprep.subr.mxu0 0.0
    %1831 = vmatpush2.msra.mxu0 0.0
    %1832 = vmatprep.subr.mxu0 0.0
    %1833 = vmatpush2.msra.mxu0 0.0
    %1834 = vmatprep.subr.mxu0 0.0
    %1835 = vmatpush2.msra.mxu0 0.0
    %1836 = vmatprep.mubr.f32.mxu0 0.0
    %1837 = vmatmul.mubr.f32.gmra.mxu0 %v1748
    %v1838 = vpop.f32.mrf.mxu0
    %v1839 = vadd.f32 %v1770, %v1838
    %v1840 = vpop.f32.mrf.mxu0
    %1841 = vdwg.mxu0
    %1842 = vst.msk [vmem:[%s6] sm:$0xff] %vm73, %v1839
    // Predicated region
    $region30: #{tpu_custom_call.1} parent=1 // pred_check
      _
    $region31: #{tpu_custom_call.1} parent=1 // pred_check_branch
      %1844 = sbr.rel (0) target = $region33
    $region32: #{tpu_custom_call.1} parent=1 // pred_region
      _
    $region33: #{tpu_custom_call.1} parent=1 // pred_fallthru
      _
    // Predicated region
    $region34: #{tpu_custom_call.1} parent=1 // pred_check
      _
    $region35: #{tpu_custom_call.1} parent=1 // pred_check_branch
      %1846 = sbr.rel (0) target = $region37
    $region36: #{tpu_custom_call.1} parent=1 // pred_region
      _
    $region37: #{tpu_custom_call.1} parent=1 // pred_fallthru
      _
    %1847 = vsyncpa [#allocation4], 1

</llo_original>
